<compile_context>
chip_gen: v5e
topology: v5e:2x2
jax: 0.10.0
libtpu: 0.0.40
codegen_flags: <defaults>
</compile_context>

<pallas_src>
import jax
import jax.numpy as jnp
from jax.experimental import pallas as pl
from jax.experimental.pallas import tpu as pltpu

EPS_BN = 1e-5
EPS_COS = 1e-8


# ---------------------------------------------------------------------------
# Fused Pallas kernel: both views, full MLP stack, loss
# ---------------------------------------------------------------------------
def _simsiam_fused_kernel(
    x1_ref, x2_ref,
    bb_w_ref, bb_b_ref,
    pin_w_ref, pin_b_ref, pin_g_ref, pin_be_ref,
    ph_w_ref, ph_b_ref, ph_g_ref, ph_be_ref,
    pout_w_ref, pout_b_ref, pout_g_ref, pout_be_ref,
    pr1_w_ref, pr1_b_ref, pr1_g_ref, pr1_be_ref,
    pr2_w_ref, pr2_b_ref,
    loss_ref,
):
    inv_hw = jnp.float32(1.0 / x1_ref.shape[-1])

    def linear(x, w_ref, b_ref, g_ref=None, be_ref=None, relu=False):
        # Linear (+ optional BatchNorm1d with per-call batch stats) (+ optional ReLU)
        y = jnp.dot(x, w_ref[...], preferred_element_type=jnp.float32) + b_ref[...]
        if g_ref is not None:
            mean = jnp.mean(y, axis=0, keepdims=True)
            var = jnp.mean((y - mean) ** 2, axis=0, keepdims=True)  # biased (train mode)
            y = (y - mean) * jax.lax.rsqrt(var + EPS_BN) * g_ref[...] + be_ref[...]
        if relu:
            y = jnp.maximum(y, 0.0)
        return y

    def encode(x_ref):
        # backbone: global average pool over spatial, then fc
        feats = jnp.sum(x_ref[...], axis=-1) * inv_hw            # (B, C)
        f = linear(feats, bb_w_ref, bb_b_ref)                    # (B, backbone_out)
        # projection MLP: Linear+BN+ReLU, Linear+BN+ReLU, Linear+BN
        h = linear(f, pin_w_ref, pin_b_ref, pin_g_ref, pin_be_ref, relu=True)
        h = linear(h, ph_w_ref, ph_b_ref, ph_g_ref, ph_be_ref, relu=True)
        z = linear(h, pout_w_ref, pout_b_ref, pout_g_ref, pout_be_ref, relu=False)
        return z

    def predict(z):
        # prediction MLP: Linear+BN+ReLU, Linear
        h = linear(z, pr1_w_ref, pr1_b_ref, pr1_g_ref, pr1_be_ref, relu=True)
        return linear(h, pr2_w_ref, pr2_b_ref)

    z1 = encode(x1_ref)
    z2 = encode(x2_ref)
    p1 = predict(z1)
    p2 = predict(z2)

    def neg_cos_mean(p, z):
        # -mean(cosine_similarity(p, z, dim=-1)); detach is a no-op in forward.
        # Match PyTorch: each norm clamped separately to eps before the product.
        dot = jnp.sum(p * z, axis=-1, keepdims=True)                         # (B, 1)
        np2 = jnp.maximum(jnp.sum(p * p, axis=-1, keepdims=True), EPS_COS * EPS_COS)
        nz2 = jnp.maximum(jnp.sum(z * z, axis=-1, keepdims=True), EPS_COS * EPS_COS)
        cos = dot * jax.lax.rsqrt(np2 * nz2)                                 # EUP rsqrt
        return -jnp.sum(cos, axis=0, keepdims=True) / jnp.float32(cos.shape[0])

    loss_ref[...] = 0.5 * neg_cos_mean(p1, z2) + 0.5 * neg_cos_mean(p2, z1)


def _full_spec(arr):
    nd = arr.ndim
    return pl.BlockSpec(arr.shape, lambda i, _nd=nd: (0,) * _nd)


def simsiam_forward(x1, x2, p):
    """x1, x2: (B, C, H, W) NCHW. Returns scalar SimSiam loss."""
    B, C, H, W = x1.shape
    xf1 = x1.reshape(B, C, H * W).astype(jnp.float32)
    xf2 = x2.reshape(B, C, H * W).astype(jnp.float32)

    def v(name):
        return p[name].astype(jnp.float32)

    def row(name):
        return p[name].reshape(1, -1).astype(jnp.float32)

    operands = (
        xf1, xf2,
        v("bb_w"), row("bb_b"),
        v("proj_in_w"), row("proj_in_b"), row("proj_in_g"), row("proj_in_be"),
        v("proj_h_w"), row("proj_h_b"), row("proj_h_g"), row("proj_h_be"),
        v("proj_out_w"), row("proj_out_b"), row("proj_out_g"), row("proj_out_be"),
        v("pred1_w"), row("pred1_b"), row("pred1_g"), row("pred1_be"),
        v("pred2_w"), row("pred2_b"),
    )

    out = pl.pallas_call(
        _simsiam_fused_kernel,
        grid=(1,),
        in_specs=[_full_spec(a) for a in operands],
        out_specs=pl.BlockSpec((1, 1), lambda i: (0, 0)),
        out_shape=jax.ShapeDtypeStruct((1, 1), jnp.float32),
        compiler_params=pltpu.CompilerParams(dimension_semantics=("arbitrary",)),
    )(*operands)
    return out[0, 0]


simsiam_forward_jit = jax.jit(simsiam_forward)


# ---------------------------------------------------------------------------
# Parameter setup (PyTorch nn.Linear default init; BN gamma=1, beta=0)
# ---------------------------------------------------------------------------
def _init_linear(key, din, dout):
    kw, kb = jax.random.split(key)
    bound = 1.0 / jnp.sqrt(jnp.float32(din))
    w = jax.random.uniform(kw, (din, dout), jnp.float32, -bound, bound)
    b = jax.random.uniform(kb, (dout,), jnp.float32, -bound, bound)
    return w, b


def init_params(key, in_ch, backbone_out, proj_hidden, proj_out, pred_hidden):
    keys = jax.random.split(key, 6)
    p = {}
    p["bb_w"], p["bb_b"] = _init_linear(keys[0], in_ch, backbone_out)
    p["proj_in_w"], p["proj_in_b"] = _init_linear(keys[1], backbone_out, proj_hidden)
    p["proj_in_g"] = jnp.ones((proj_hidden,), jnp.float32)
    p["proj_in_be"] = jnp.zeros((proj_hidden,), jnp.float32)
    p["proj_h_w"], p["proj_h_b"] = _init_linear(keys[2], proj_hidden, proj_hidden)
    p["proj_h_g"] = jnp.ones((proj_hidden,), jnp.float32)
    p["proj_h_be"] = jnp.zeros((proj_hidden,), jnp.float32)
    p["proj_out_w"], p["proj_out_b"] = _init_linear(keys[3], proj_hidden, proj_out)
    p["proj_out_g"] = jnp.ones((proj_out,), jnp.float32)
    p["proj_out_be"] = jnp.zeros((proj_out,), jnp.float32)
    p["pred1_w"], p["pred1_b"] = _init_linear(keys[4], proj_out, pred_hidden)
    p["pred1_g"] = jnp.ones((pred_hidden,), jnp.float32)
    p["pred1_be"] = jnp.zeros((pred_hidden,), jnp.float32)
    p["pred2_w"], p["pred2_b"] = _init_linear(keys[5], pred_hidden, proj_out)
    return p


# ---------------------------------------------------------------------------
# Pure-JAX reference (same math) for correctness check
# ---------------------------------------------------------------------------
def _ref_linear(x, w, b, g=None, be=None, use_bn=False, use_relu=False):
    y = x @ w + b
    if use_bn:
        m = jnp.mean(y, axis=0, keepdims=True)
        v = jnp.mean((y - m) ** 2, axis=0, keepdims=True)
        y = (y - m) * jax.lax.rsqrt(v + EPS_BN) * g + be
    if use_relu:
        y = jnp.maximum(y, 0.0)
    return y


def _ref_encoder(x, p):
    f = jnp.mean(x.reshape(x.shape[0], x.shape[1], -1), axis=-1)
    f = _ref_linear(f, p["bb_w"], p["bb_b"])
    h = _ref_linear(f, p["proj_in_w"], p["proj_in_b"], p["proj_in_g"], p["proj_in_be"], True, True)
    h = _ref_linear(h, p["proj_h_w"], p["proj_h_b"], p["proj_h_g"], p["proj_h_be"], True, True)
    return _ref_linear(h, p["proj_out_w"], p["proj_out_b"], p["proj_out_g"], p["proj_out_be"], True, False)


def _ref_forward(x1, x2, p):
    def pred(z):
        h = _ref_linear(z, p["pred1_w"], p["pred1_b"], p["pred1_g"], p["pred1_be"], True, True)
        return _ref_linear(h, p["pred2_w"], p["pred2_b"])

    def D(pv, zv):
        dot = jnp.sum(pv * zv, axis=-1)
        den = jnp.maximum(jnp.linalg.norm(pv, axis=-1), EPS_COS) * \
              jnp.maximum(jnp.linalg.norm(zv, axis=-1), EPS_COS)
        return -jnp.mean(dot / den)

    z1, z2 = _ref_encoder(x1, p), _ref_encoder(x2, p)
    p1, p2 = pred(z1), pred(z2)
    return 0.5 * D(p1, z2) + 0.5 * D(p2, z1)


# ---------------------------------------------------------------------------
if __name__ == "__main__":
    key = jax.random.PRNGKey(0)
    k_x1, k_x2, k_par = jax.random.split(key, 3)

    B, C, H, W = 8, 4, 16, 16
    BACKBONE_OUT, PROJ_HIDDEN, PROJ_OUT, PRED_HIDDEN = 32, 32, 32, 16

    x1 = jax.random.normal(k_x1, (B, C, H, W), jnp.float32)
    x2 = jax.random.normal(k_x2, (B, C, H, W), jnp.float32)
    params = init_params(k_par, C, BACKBONE_OUT, PROJ_HIDDEN, PROJ_OUT, PRED_HIDDEN)

    loss = jax.block_until_ready(simsiam_forward_jit(x1, x2, params))
    ref = jax.block_until_ready(_ref_forward(x1, x2, params))
    assert jnp.allclose(loss, ref, atol=1e-4, rtol=1e-4), (loss, ref)

    print("KERNEL_OK")
</pallas_src>

<mosaic_0001>
module attributes {stable_mosaic.version = 11 : i64} {
  func.func @_simsiam_fused_kernel(%arg0: i32, %arg1: memref<8x4x256xf32, #tpu.memory_space<vmem>>, %arg2: memref<8x4x256xf32, #tpu.memory_space<vmem>>, %arg3: memref<4x32xf32, #tpu.memory_space<vmem>>, %arg4: memref<1x32xf32, #tpu.memory_space<vmem>>, %arg5: memref<32x32xf32, #tpu.memory_space<vmem>>, %arg6: memref<1x32xf32, #tpu.memory_space<vmem>>, %arg7: memref<1x32xf32, #tpu.memory_space<vmem>>, %arg8: memref<1x32xf32, #tpu.memory_space<vmem>>, %arg9: memref<32x32xf32, #tpu.memory_space<vmem>>, %arg10: memref<1x32xf32, #tpu.memory_space<vmem>>, %arg11: memref<1x32xf32, #tpu.memory_space<vmem>>, %arg12: memref<1x32xf32, #tpu.memory_space<vmem>>, %arg13: memref<32x32xf32, #tpu.memory_space<vmem>>, %arg14: memref<1x32xf32, #tpu.memory_space<vmem>>, %arg15: memref<1x32xf32, #tpu.memory_space<vmem>>, %arg16: memref<1x32xf32, #tpu.memory_space<vmem>>, %arg17: memref<32x16xf32, #tpu.memory_space<vmem>>, %arg18: memref<1x16xf32, #tpu.memory_space<vmem>>, %arg19: memref<1x16xf32, #tpu.memory_space<vmem>>, %arg20: memref<1x16xf32, #tpu.memory_space<vmem>>, %arg21: memref<16x32xf32, #tpu.memory_space<vmem>>, %arg22: memref<1x32xf32, #tpu.memory_space<vmem>>, %arg23: memref<1x1xf32, #tpu.memory_space<vmem>>) attributes {dimension_semantics = [#tpu.dimension_semantics<arbitrary>], iteration_bounds = array<i64: 1>, scalar_prefetch = 0 : i64, scratch_operands = 0 : i64, tpu.core_type = #tpu.core_type<tc>, window_params = [{pipeline_mode = #tpu.pipeline_mode<synchronous>, transform_indices = @transform_0, window_bounds = array<i64: 8, 4, 256>}, {pipeline_mode = #tpu.pipeline_mode<synchronous>, transform_indices = @transform_1, window_bounds = array<i64: 8, 4, 256>}, {pipeline_mode = #tpu.pipeline_mode<synchronous>, transform_indices = @transform_2, window_bounds = array<i64: 4, 32>}, {pipeline_mode = #tpu.pipeline_mode<synchronous>, transform_indices = @transform_3, window_bounds = array<i64: 1, 32>}, {pipeline_mode = #tpu.pipeline_mode<synchronous>, transform_indices = @transform_4, window_bounds = array<i64: 32, 32>}, {pipeline_mode = #tpu.pipeline_mode<synchronous>, transform_indices = @transform_5, window_bounds = array<i64: 1, 32>}, {pipeline_mode = #tpu.pipeline_mode<synchronous>, transform_indices = @transform_6, window_bounds = array<i64: 1, 32>}, {pipeline_mode = #tpu.pipeline_mode<synchronous>, transform_indices = @transform_7, window_bounds = array<i64: 1, 32>}, {pipeline_mode = #tpu.pipeline_mode<synchronous>, transform_indices = @transform_8, window_bounds = array<i64: 32, 32>}, {pipeline_mode = #tpu.pipeline_mode<synchronous>, transform_indices = @transform_9, window_bounds = array<i64: 1, 32>}, {pipeline_mode = #tpu.pipeline_mode<synchronous>, transform_indices = @transform_10, window_bounds = array<i64: 1, 32>}, {pipeline_mode = #tpu.pipeline_mode<synchronous>, transform_indices = @transform_11, window_bounds = array<i64: 1, 32>}, {pipeline_mode = #tpu.pipeline_mode<synchronous>, transform_indices = @transform_12, window_bounds = array<i64: 32, 32>}, {pipeline_mode = #tpu.pipeline_mode<synchronous>, transform_indices = @transform_13, window_bounds = array<i64: 1, 32>}, {pipeline_mode = #tpu.pipeline_mode<synchronous>, transform_indices = @transform_14, window_bounds = array<i64: 1, 32>}, {pipeline_mode = #tpu.pipeline_mode<synchronous>, transform_indices = @transform_15, window_bounds = array<i64: 1, 32>}, {pipeline_mode = #tpu.pipeline_mode<synchronous>, transform_indices = @transform_16, window_bounds = array<i64: 32, 16>}, {pipeline_mode = #tpu.pipeline_mode<synchronous>, transform_indices = @transform_17, window_bounds = array<i64: 1, 16>}, {pipeline_mode = #tpu.pipeline_mode<synchronous>, transform_indices = @transform_18, window_bounds = array<i64: 1, 16>}, {pipeline_mode = #tpu.pipeline_mode<synchronous>, transform_indices = @transform_19, window_bounds = array<i64: 1, 16>}, {pipeline_mode = #tpu.pipeline_mode<synchronous>, transform_indices = @transform_20, window_bounds = array<i64: 16, 32>}, {pipeline_mode = #tpu.pipeline_mode<synchronous>, transform_indices = @transform_21, window_bounds = array<i64: 1, 32>}, {pipeline_mode = #tpu.pipeline_mode<synchronous>, transform_indices = @transform_22, window_bounds = array<i64: 1, 1>}]} {
    %c0 = arith.constant 0 : index
    %c0_0 = arith.constant 0 : index
    %c0_1 = arith.constant 0 : index
    %0 = vector.load %arg1[%c0, %c0_0, %c0_1] : memref<8x4x256xf32, #tpu.memory_space<vmem>>, vector<8x4x256xf32>
    %cst = arith.constant dense<0.000000e+00> : vector<8x4xf32>
    %1 = vector.multi_reduction <add>, %0, %cst [2] : vector<8x4x256xf32> to vector<8x4xf32>
    %cst_2 = arith.constant 3.906250e-03 : f32
    %2 = vector.broadcast %cst_2 : f32 to vector<8x4xf32>
    %3 = arith.mulf %1, %2 : vector<8x4xf32>
    %c0_3 = arith.constant 0 : index
    %c0_4 = arith.constant 0 : index
    %4 = vector.load %arg3[%c0_3, %c0_4] : memref<4x32xf32, #tpu.memory_space<vmem>>, vector<4x32xf32>
    %cst_5 = arith.constant dense<0.000000e+00> : vector<8x32xf32>
    %5 = tpu.matmul %3, %4, %cst_5 {dimension_numbers = #tpu.dot_dimension_numbers<[1], [0], [0], [1], [0, 0, 1, 1], [], []>} : vector<8x4xf32>, vector<4x32xf32>, vector<8x32xf32> -> vector<8x32xf32>
    %c0_6 = arith.constant 0 : index
    %c0_7 = arith.constant 0 : index
    %6 = vector.load %arg4[%c0_6, %c0_7] : memref<1x32xf32, #tpu.memory_space<vmem>>, vector<1x32xf32>
    %7 = vector.broadcast %6 : vector<1x32xf32> to vector<8x32xf32>
    %8 = arith.addf %5, %7 : vector<8x32xf32>
    %c0_8 = arith.constant 0 : index
    %c0_9 = arith.constant 0 : index
    %9 = vector.load %arg5[%c0_8, %c0_9] : memref<32x32xf32, #tpu.memory_space<vmem>>, vector<32x32xf32>
    %cst_10 = arith.constant dense<0.000000e+00> : vector<8x32xf32>
    %10 = tpu.matmul %8, %9, %cst_10 {dimension_numbers = #tpu.dot_dimension_numbers<[1], [0], [0], [1], [0, 0, 1, 1], [], []>} : vector<8x32xf32>, vector<32x32xf32>, vector<8x32xf32> -> vector<8x32xf32>
    %c0_11 = arith.constant 0 : index
    %c0_12 = arith.constant 0 : index
    %11 = vector.load %arg6[%c0_11, %c0_12] : memref<1x32xf32, #tpu.memory_space<vmem>>, vector<1x32xf32>
    %12 = vector.broadcast %11 : vector<1x32xf32> to vector<8x32xf32>
    %13 = arith.addf %10, %12 : vector<8x32xf32>
    %cst_13 = arith.constant dense<0.000000e+00> : vector<32xf32>
    %14 = vector.multi_reduction <add>, %13, %cst_13 [0] : vector<8x32xf32> to vector<32xf32>
    %15 = vector.shape_cast %14 : vector<32xf32> to vector<1x32xf32>
    %cst_14 = arith.constant 8.000000e+00 : f32
    %16 = vector.broadcast %cst_14 : f32 to vector<1x32xf32>
    %17 = arith.divf %15, %16 : vector<1x32xf32>
    %18 = vector.broadcast %17 : vector<1x32xf32> to vector<8x32xf32>
    %19 = arith.subf %13, %18 : vector<8x32xf32>
    %20 = arith.mulf %19, %19 : vector<8x32xf32>
    %cst_15 = arith.constant dense<0.000000e+00> : vector<32xf32>
    %21 = vector.multi_reduction <add>, %20, %cst_15 [0] : vector<8x32xf32> to vector<32xf32>
    %22 = vector.shape_cast %21 : vector<32xf32> to vector<1x32xf32>
    %cst_16 = arith.constant 8.000000e+00 : f32
    %23 = vector.broadcast %cst_16 : f32 to vector<1x32xf32>
    %24 = arith.divf %22, %23 : vector<1x32xf32>
    %25 = vector.broadcast %17 : vector<1x32xf32> to vector<8x32xf32>
    %26 = arith.subf %13, %25 : vector<8x32xf32>
    %cst_17 = arith.constant 9.99999974E-6 : f32
    %27 = vector.broadcast %cst_17 : f32 to vector<1x32xf32>
    %28 = arith.addf %24, %27 : vector<1x32xf32>
    %29 = math.rsqrt %28 : vector<1x32xf32>
    %30 = vector.broadcast %29 : vector<1x32xf32> to vector<8x32xf32>
    %31 = arith.mulf %26, %30 : vector<8x32xf32>
    %c0_18 = arith.constant 0 : index
    %c0_19 = arith.constant 0 : index
    %32 = vector.load %arg7[%c0_18, %c0_19] : memref<1x32xf32, #tpu.memory_space<vmem>>, vector<1x32xf32>
    %33 = vector.broadcast %32 : vector<1x32xf32> to vector<8x32xf32>
    %34 = arith.mulf %31, %33 : vector<8x32xf32>
    %c0_20 = arith.constant 0 : index
    %c0_21 = arith.constant 0 : index
    %35 = vector.load %arg8[%c0_20, %c0_21] : memref<1x32xf32, #tpu.memory_space<vmem>>, vector<1x32xf32>
    %36 = vector.broadcast %35 : vector<1x32xf32> to vector<8x32xf32>
    %37 = arith.addf %34, %36 : vector<8x32xf32>
    %cst_22 = arith.constant 0.000000e+00 : f32
    %38 = vector.broadcast %cst_22 : f32 to vector<8x32xf32>
    %39 = arith.maximumf %37, %38 : vector<8x32xf32>
    %c0_23 = arith.constant 0 : index
    %c0_24 = arith.constant 0 : index
    %40 = vector.load %arg9[%c0_23, %c0_24] : memref<32x32xf32, #tpu.memory_space<vmem>>, vector<32x32xf32>
    %cst_25 = arith.constant dense<0.000000e+00> : vector<8x32xf32>
    %41 = tpu.matmul %39, %40, %cst_25 {dimension_numbers = #tpu.dot_dimension_numbers<[1], [0], [0], [1], [0, 0, 1, 1], [], []>} : vector<8x32xf32>, vector<32x32xf32>, vector<8x32xf32> -> vector<8x32xf32>
    %c0_26 = arith.constant 0 : index
    %c0_27 = arith.constant 0 : index
    %42 = vector.load %arg10[%c0_26, %c0_27] : memref<1x32xf32, #tpu.memory_space<vmem>>, vector<1x32xf32>
    %43 = vector.broadcast %42 : vector<1x32xf32> to vector<8x32xf32>
    %44 = arith.addf %41, %43 : vector<8x32xf32>
    %cst_28 = arith.constant dense<0.000000e+00> : vector<32xf32>
    %45 = vector.multi_reduction <add>, %44, %cst_28 [0] : vector<8x32xf32> to vector<32xf32>
    %46 = vector.shape_cast %45 : vector<32xf32> to vector<1x32xf32>
    %cst_29 = arith.constant 8.000000e+00 : f32
    %47 = vector.broadcast %cst_29 : f32 to vector<1x32xf32>
    %48 = arith.divf %46, %47 : vector<1x32xf32>
    %49 = vector.broadcast %48 : vector<1x32xf32> to vector<8x32xf32>
    %50 = arith.subf %44, %49 : vector<8x32xf32>
    %51 = arith.mulf %50, %50 : vector<8x32xf32>
    %cst_30 = arith.constant dense<0.000000e+00> : vector<32xf32>
    %52 = vector.multi_reduction <add>, %51, %cst_30 [0] : vector<8x32xf32> to vector<32xf32>
    %53 = vector.shape_cast %52 : vector<32xf32> to vector<1x32xf32>
    %cst_31 = arith.constant 8.000000e+00 : f32
    %54 = vector.broadcast %cst_31 : f32 to vector<1x32xf32>
    %55 = arith.divf %53, %54 : vector<1x32xf32>
    %56 = vector.broadcast %48 : vector<1x32xf32> to vector<8x32xf32>
    %57 = arith.subf %44, %56 : vector<8x32xf32>
    %cst_32 = arith.constant 9.99999974E-6 : f32
    %58 = vector.broadcast %cst_32 : f32 to vector<1x32xf32>
    %59 = arith.addf %55, %58 : vector<1x32xf32>
    %60 = math.rsqrt %59 : vector<1x32xf32>
    %61 = vector.broadcast %60 : vector<1x32xf32> to vector<8x32xf32>
    %62 = arith.mulf %57, %61 : vector<8x32xf32>
    %c0_33 = arith.constant 0 : index
    %c0_34 = arith.constant 0 : index
    %63 = vector.load %arg11[%c0_33, %c0_34] : memref<1x32xf32, #tpu.memory_space<vmem>>, vector<1x32xf32>
    %64 = vector.broadcast %63 : vector<1x32xf32> to vector<8x32xf32>
    %65 = arith.mulf %62, %64 : vector<8x32xf32>
    %c0_35 = arith.constant 0 : index
    %c0_36 = arith.constant 0 : index
    %66 = vector.load %arg12[%c0_35, %c0_36] : memref<1x32xf32, #tpu.memory_space<vmem>>, vector<1x32xf32>
    %67 = vector.broadcast %66 : vector<1x32xf32> to vector<8x32xf32>
    %68 = arith.addf %65, %67 : vector<8x32xf32>
    %cst_37 = arith.constant 0.000000e+00 : f32
    %69 = vector.broadcast %cst_37 : f32 to vector<8x32xf32>
    %70 = arith.maximumf %68, %69 : vector<8x32xf32>
    %c0_38 = arith.constant 0 : index
    %c0_39 = arith.constant 0 : index
    %71 = vector.load %arg13[%c0_38, %c0_39] : memref<32x32xf32, #tpu.memory_space<vmem>>, vector<32x32xf32>
    %cst_40 = arith.constant dense<0.000000e+00> : vector<8x32xf32>
    %72 = tpu.matmul %70, %71, %cst_40 {dimension_numbers = #tpu.dot_dimension_numbers<[1], [0], [0], [1], [0, 0, 1, 1], [], []>} : vector<8x32xf32>, vector<32x32xf32>, vector<8x32xf32> -> vector<8x32xf32>
    %c0_41 = arith.constant 0 : index
    %c0_42 = arith.constant 0 : index
    %73 = vector.load %arg14[%c0_41, %c0_42] : memref<1x32xf32, #tpu.memory_space<vmem>>, vector<1x32xf32>
    %74 = vector.broadcast %73 : vector<1x32xf32> to vector<8x32xf32>
    %75 = arith.addf %72, %74 : vector<8x32xf32>
    %cst_43 = arith.constant dense<0.000000e+00> : vector<32xf32>
    %76 = vector.multi_reduction <add>, %75, %cst_43 [0] : vector<8x32xf32> to vector<32xf32>
    %77 = vector.shape_cast %76 : vector<32xf32> to vector<1x32xf32>
    %cst_44 = arith.constant 8.000000e+00 : f32
    %78 = vector.broadcast %cst_44 : f32 to vector<1x32xf32>
    %79 = arith.divf %77, %78 : vector<1x32xf32>
    %80 = vector.broadcast %79 : vector<1x32xf32> to vector<8x32xf32>
    %81 = arith.subf %75, %80 : vector<8x32xf32>
    %82 = arith.mulf %81, %81 : vector<8x32xf32>
    %cst_45 = arith.constant dense<0.000000e+00> : vector<32xf32>
    %83 = vector.multi_reduction <add>, %82, %cst_45 [0] : vector<8x32xf32> to vector<32xf32>
    %84 = vector.shape_cast %83 : vector<32xf32> to vector<1x32xf32>
    %cst_46 = arith.constant 8.000000e+00 : f32
    %85 = vector.broadcast %cst_46 : f32 to vector<1x32xf32>
    %86 = arith.divf %84, %85 : vector<1x32xf32>
    %87 = vector.broadcast %79 : vector<1x32xf32> to vector<8x32xf32>
    %88 = arith.subf %75, %87 : vector<8x32xf32>
    %cst_47 = arith.constant 9.99999974E-6 : f32
    %89 = vector.broadcast %cst_47 : f32 to vector<1x32xf32>
    %90 = arith.addf %86, %89 : vector<1x32xf32>
    %91 = math.rsqrt %90 : vector<1x32xf32>
    %92 = vector.broadcast %91 : vector<1x32xf32> to vector<8x32xf32>
    %93 = arith.mulf %88, %92 : vector<8x32xf32>
    %c0_48 = arith.constant 0 : index
    %c0_49 = arith.constant 0 : index
    %94 = vector.load %arg15[%c0_48, %c0_49] : memref<1x32xf32, #tpu.memory_space<vmem>>, vector<1x32xf32>
    %95 = vector.broadcast %94 : vector<1x32xf32> to vector<8x32xf32>
    %96 = arith.mulf %93, %95 : vector<8x32xf32>
    %c0_50 = arith.constant 0 : index
    %c0_51 = arith.constant 0 : index
    %97 = vector.load %arg16[%c0_50, %c0_51] : memref<1x32xf32, #tpu.memory_space<vmem>>, vector<1x32xf32>
    %98 = vector.broadcast %97 : vector<1x32xf32> to vector<8x32xf32>
    %99 = arith.addf %96, %98 : vector<8x32xf32>
    %c0_52 = arith.constant 0 : index
    %c0_53 = arith.constant 0 : index
    %c0_54 = arith.constant 0 : index
    %100 = vector.load %arg2[%c0_52, %c0_53, %c0_54] : memref<8x4x256xf32, #tpu.memory_space<vmem>>, vector<8x4x256xf32>
    %cst_55 = arith.constant dense<0.000000e+00> : vector<8x4xf32>
    %101 = vector.multi_reduction <add>, %100, %cst_55 [2] : vector<8x4x256xf32> to vector<8x4xf32>
    %cst_56 = arith.constant 3.906250e-03 : f32
    %102 = vector.broadcast %cst_56 : f32 to vector<8x4xf32>
    %103 = arith.mulf %101, %102 : vector<8x4xf32>
    %c0_57 = arith.constant 0 : index
    %c0_58 = arith.constant 0 : index
    %104 = vector.load %arg3[%c0_57, %c0_58] : memref<4x32xf32, #tpu.memory_space<vmem>>, vector<4x32xf32>
    %cst_59 = arith.constant dense<0.000000e+00> : vector<8x32xf32>
    %105 = tpu.matmul %103, %104, %cst_59 {dimension_numbers = #tpu.dot_dimension_numbers<[1], [0], [0], [1], [0, 0, 1, 1], [], []>} : vector<8x4xf32>, vector<4x32xf32>, vector<8x32xf32> -> vector<8x32xf32>
    %c0_60 = arith.constant 0 : index
    %c0_61 = arith.constant 0 : index
    %106 = vector.load %arg4[%c0_60, %c0_61] : memref<1x32xf32, #tpu.memory_space<vmem>>, vector<1x32xf32>
    %107 = vector.broadcast %106 : vector<1x32xf32> to vector<8x32xf32>
    %108 = arith.addf %105, %107 : vector<8x32xf32>
    %c0_62 = arith.constant 0 : index
    %c0_63 = arith.constant 0 : index
    %109 = vector.load %arg5[%c0_62, %c0_63] : memref<32x32xf32, #tpu.memory_space<vmem>>, vector<32x32xf32>
    %cst_64 = arith.constant dense<0.000000e+00> : vector<8x32xf32>
    %110 = tpu.matmul %108, %109, %cst_64 {dimension_numbers = #tpu.dot_dimension_numbers<[1], [0], [0], [1], [0, 0, 1, 1], [], []>} : vector<8x32xf32>, vector<32x32xf32>, vector<8x32xf32> -> vector<8x32xf32>
    %c0_65 = arith.constant 0 : index
    %c0_66 = arith.constant 0 : index
    %111 = vector.load %arg6[%c0_65, %c0_66] : memref<1x32xf32, #tpu.memory_space<vmem>>, vector<1x32xf32>
    %112 = vector.broadcast %111 : vector<1x32xf32> to vector<8x32xf32>
    %113 = arith.addf %110, %112 : vector<8x32xf32>
    %cst_67 = arith.constant dense<0.000000e+00> : vector<32xf32>
    %114 = vector.multi_reduction <add>, %113, %cst_67 [0] : vector<8x32xf32> to vector<32xf32>
    %115 = vector.shape_cast %114 : vector<32xf32> to vector<1x32xf32>
    %cst_68 = arith.constant 8.000000e+00 : f32
    %116 = vector.broadcast %cst_68 : f32 to vector<1x32xf32>
    %117 = arith.divf %115, %116 : vector<1x32xf32>
    %118 = vector.broadcast %117 : vector<1x32xf32> to vector<8x32xf32>
    %119 = arith.subf %113, %118 : vector<8x32xf32>
    %120 = arith.mulf %119, %119 : vector<8x32xf32>
    %cst_69 = arith.constant dense<0.000000e+00> : vector<32xf32>
    %121 = vector.multi_reduction <add>, %120, %cst_69 [0] : vector<8x32xf32> to vector<32xf32>
    %122 = vector.shape_cast %121 : vector<32xf32> to vector<1x32xf32>
    %cst_70 = arith.constant 8.000000e+00 : f32
    %123 = vector.broadcast %cst_70 : f32 to vector<1x32xf32>
    %124 = arith.divf %122, %123 : vector<1x32xf32>
    %125 = vector.broadcast %117 : vector<1x32xf32> to vector<8x32xf32>
    %126 = arith.subf %113, %125 : vector<8x32xf32>
    %cst_71 = arith.constant 9.99999974E-6 : f32
    %127 = vector.broadcast %cst_71 : f32 to vector<1x32xf32>
    %128 = arith.addf %124, %127 : vector<1x32xf32>
    %129 = math.rsqrt %128 : vector<1x32xf32>
    %130 = vector.broadcast %129 : vector<1x32xf32> to vector<8x32xf32>
    %131 = arith.mulf %126, %130 : vector<8x32xf32>
    %c0_72 = arith.constant 0 : index
    %c0_73 = arith.constant 0 : index
    %132 = vector.load %arg7[%c0_72, %c0_73] : memref<1x32xf32, #tpu.memory_space<vmem>>, vector<1x32xf32>
    %133 = vector.broadcast %132 : vector<1x32xf32> to vector<8x32xf32>
    %134 = arith.mulf %131, %133 : vector<8x32xf32>
    %c0_74 = arith.constant 0 : index
    %c0_75 = arith.constant 0 : index
    %135 = vector.load %arg8[%c0_74, %c0_75] : memref<1x32xf32, #tpu.memory_space<vmem>>, vector<1x32xf32>
    %136 = vector.broadcast %135 : vector<1x32xf32> to vector<8x32xf32>
    %137 = arith.addf %134, %136 : vector<8x32xf32>
    %cst_76 = arith.constant 0.000000e+00 : f32
    %138 = vector.broadcast %cst_76 : f32 to vector<8x32xf32>
    %139 = arith.maximumf %137, %138 : vector<8x32xf32>
    %c0_77 = arith.constant 0 : index
    %c0_78 = arith.constant 0 : index
    %140 = vector.load %arg9[%c0_77, %c0_78] : memref<32x32xf32, #tpu.memory_space<vmem>>, vector<32x32xf32>
    %cst_79 = arith.constant dense<0.000000e+00> : vector<8x32xf32>
    %141 = tpu.matmul %139, %140, %cst_79 {dimension_numbers = #tpu.dot_dimension_numbers<[1], [0], [0], [1], [0, 0, 1, 1], [], []>} : vector<8x32xf32>, vector<32x32xf32>, vector<8x32xf32> -> vector<8x32xf32>
    %c0_80 = arith.constant 0 : index
    %c0_81 = arith.constant 0 : index
    %142 = vector.load %arg10[%c0_80, %c0_81] : memref<1x32xf32, #tpu.memory_space<vmem>>, vector<1x32xf32>
    %143 = vector.broadcast %142 : vector<1x32xf32> to vector<8x32xf32>
    %144 = arith.addf %141, %143 : vector<8x32xf32>
    %cst_82 = arith.constant dense<0.000000e+00> : vector<32xf32>
    %145 = vector.multi_reduction <add>, %144, %cst_82 [0] : vector<8x32xf32> to vector<32xf32>
    %146 = vector.shape_cast %145 : vector<32xf32> to vector<1x32xf32>
    %cst_83 = arith.constant 8.000000e+00 : f32
    %147 = vector.broadcast %cst_83 : f32 to vector<1x32xf32>
    %148 = arith.divf %146, %147 : vector<1x32xf32>
    %149 = vector.broadcast %148 : vector<1x32xf32> to vector<8x32xf32>
    %150 = arith.subf %144, %149 : vector<8x32xf32>
    %151 = arith.mulf %150, %150 : vector<8x32xf32>
    %cst_84 = arith.constant dense<0.000000e+00> : vector<32xf32>
    %152 = vector.multi_reduction <add>, %151, %cst_84 [0] : vector<8x32xf32> to vector<32xf32>
    %153 = vector.shape_cast %152 : vector<32xf32> to vector<1x32xf32>
    %cst_85 = arith.constant 8.000000e+00 : f32
    %154 = vector.broadcast %cst_85 : f32 to vector<1x32xf32>
    %155 = arith.divf %153, %154 : vector<1x32xf32>
    %156 = vector.broadcast %148 : vector<1x32xf32> to vector<8x32xf32>
    %157 = arith.subf %144, %156 : vector<8x32xf32>
    %cst_86 = arith.constant 9.99999974E-6 : f32
    %158 = vector.broadcast %cst_86 : f32 to vector<1x32xf32>
    %159 = arith.addf %155, %158 : vector<1x32xf32>
    %160 = math.rsqrt %159 : vector<1x32xf32>
    %161 = vector.broadcast %160 : vector<1x32xf32> to vector<8x32xf32>
    %162 = arith.mulf %157, %161 : vector<8x32xf32>
    %c0_87 = arith.constant 0 : index
    %c0_88 = arith.constant 0 : index
    %163 = vector.load %arg11[%c0_87, %c0_88] : memref<1x32xf32, #tpu.memory_space<vmem>>, vector<1x32xf32>
    %164 = vector.broadcast %163 : vector<1x32xf32> to vector<8x32xf32>
    %165 = arith.mulf %162, %164 : vector<8x32xf32>
    %c0_89 = arith.constant 0 : index
    %c0_90 = arith.constant 0 : index
    %166 = vector.load %arg12[%c0_89, %c0_90] : memref<1x32xf32, #tpu.memory_space<vmem>>, vector<1x32xf32>
    %167 = vector.broadcast %166 : vector<1x32xf32> to vector<8x32xf32>
    %168 = arith.addf %165, %167 : vector<8x32xf32>
    %cst_91 = arith.constant 0.000000e+00 : f32
    %169 = vector.broadcast %cst_91 : f32 to vector<8x32xf32>
    %170 = arith.maximumf %168, %169 : vector<8x32xf32>
    %c0_92 = arith.constant 0 : index
    %c0_93 = arith.constant 0 : index
    %171 = vector.load %arg13[%c0_92, %c0_93] : memref<32x32xf32, #tpu.memory_space<vmem>>, vector<32x32xf32>
    %cst_94 = arith.constant dense<0.000000e+00> : vector<8x32xf32>
    %172 = tpu.matmul %170, %171, %cst_94 {dimension_numbers = #tpu.dot_dimension_numbers<[1], [0], [0], [1], [0, 0, 1, 1], [], []>} : vector<8x32xf32>, vector<32x32xf32>, vector<8x32xf32> -> vector<8x32xf32>
    %c0_95 = arith.constant 0 : index
    %c0_96 = arith.constant 0 : index
    %173 = vector.load %arg14[%c0_95, %c0_96] : memref<1x32xf32, #tpu.memory_space<vmem>>, vector<1x32xf32>
    %174 = vector.broadcast %173 : vector<1x32xf32> to vector<8x32xf32>
    %175 = arith.addf %172, %174 : vector<8x32xf32>
    %cst_97 = arith.constant dense<0.000000e+00> : vector<32xf32>
    %176 = vector.multi_reduction <add>, %175, %cst_97 [0] : vector<8x32xf32> to vector<32xf32>
    %177 = vector.shape_cast %176 : vector<32xf32> to vector<1x32xf32>
    %cst_98 = arith.constant 8.000000e+00 : f32
    %178 = vector.broadcast %cst_98 : f32 to vector<1x32xf32>
    %179 = arith.divf %177, %178 : vector<1x32xf32>
    %180 = vector.broadcast %179 : vector<1x32xf32> to vector<8x32xf32>
    %181 = arith.subf %175, %180 : vector<8x32xf32>
    %182 = arith.mulf %181, %181 : vector<8x32xf32>
    %cst_99 = arith.constant dense<0.000000e+00> : vector<32xf32>
    %183 = vector.multi_reduction <add>, %182, %cst_99 [0] : vector<8x32xf32> to vector<32xf32>
    %184 = vector.shape_cast %183 : vector<32xf32> to vector<1x32xf32>
    %cst_100 = arith.constant 8.000000e+00 : f32
    %185 = vector.broadcast %cst_100 : f32 to vector<1x32xf32>
    %186 = arith.divf %184, %185 : vector<1x32xf32>
    %187 = vector.broadcast %179 : vector<1x32xf32> to vector<8x32xf32>
    %188 = arith.subf %175, %187 : vector<8x32xf32>
    %cst_101 = arith.constant 9.99999974E-6 : f32
    %189 = vector.broadcast %cst_101 : f32 to vector<1x32xf32>
    %190 = arith.addf %186, %189 : vector<1x32xf32>
    %191 = math.rsqrt %190 : vector<1x32xf32>
    %192 = vector.broadcast %191 : vector<1x32xf32> to vector<8x32xf32>
    %193 = arith.mulf %188, %192 : vector<8x32xf32>
    %c0_102 = arith.constant 0 : index
    %c0_103 = arith.constant 0 : index
    %194 = vector.load %arg15[%c0_102, %c0_103] : memref<1x32xf32, #tpu.memory_space<vmem>>, vector<1x32xf32>
    %195 = vector.broadcast %194 : vector<1x32xf32> to vector<8x32xf32>
    %196 = arith.mulf %193, %195 : vector<8x32xf32>
    %c0_104 = arith.constant 0 : index
    %c0_105 = arith.constant 0 : index
    %197 = vector.load %arg16[%c0_104, %c0_105] : memref<1x32xf32, #tpu.memory_space<vmem>>, vector<1x32xf32>
    %198 = vector.broadcast %197 : vector<1x32xf32> to vector<8x32xf32>
    %199 = arith.addf %196, %198 : vector<8x32xf32>
    %c0_106 = arith.constant 0 : index
    %c0_107 = arith.constant 0 : index
    %200 = vector.load %arg17[%c0_106, %c0_107] : memref<32x16xf32, #tpu.memory_space<vmem>>, vector<32x16xf32>
    %cst_108 = arith.constant dense<0.000000e+00> : vector<8x16xf32>
    %201 = tpu.matmul %99, %200, %cst_108 {dimension_numbers = #tpu.dot_dimension_numbers<[1], [0], [0], [1], [0, 0, 1, 1], [], []>} : vector<8x32xf32>, vector<32x16xf32>, vector<8x16xf32> -> vector<8x16xf32>
    %c0_109 = arith.constant 0 : index
    %c0_110 = arith.constant 0 : index
    %202 = vector.load %arg18[%c0_109, %c0_110] : memref<1x16xf32, #tpu.memory_space<vmem>>, vector<1x16xf32>
    %203 = vector.broadcast %202 : vector<1x16xf32> to vector<8x16xf32>
    %204 = arith.addf %201, %203 : vector<8x16xf32>
    %cst_111 = arith.constant dense<0.000000e+00> : vector<16xf32>
    %205 = vector.multi_reduction <add>, %204, %cst_111 [0] : vector<8x16xf32> to vector<16xf32>
    %206 = vector.shape_cast %205 : vector<16xf32> to vector<1x16xf32>
    %cst_112 = arith.constant 8.000000e+00 : f32
    %207 = vector.broadcast %cst_112 : f32 to vector<1x16xf32>
    %208 = arith.divf %206, %207 : vector<1x16xf32>
    %209 = vector.broadcast %208 : vector<1x16xf32> to vector<8x16xf32>
    %210 = arith.subf %204, %209 : vector<8x16xf32>
    %211 = arith.mulf %210, %210 : vector<8x16xf32>
    %cst_113 = arith.constant dense<0.000000e+00> : vector<16xf32>
    %212 = vector.multi_reduction <add>, %211, %cst_113 [0] : vector<8x16xf32> to vector<16xf32>
    %213 = vector.shape_cast %212 : vector<16xf32> to vector<1x16xf32>
    %cst_114 = arith.constant 8.000000e+00 : f32
    %214 = vector.broadcast %cst_114 : f32 to vector<1x16xf32>
    %215 = arith.divf %213, %214 : vector<1x16xf32>
    %216 = vector.broadcast %208 : vector<1x16xf32> to vector<8x16xf32>
    %217 = arith.subf %204, %216 : vector<8x16xf32>
    %cst_115 = arith.constant 9.99999974E-6 : f32
    %218 = vector.broadcast %cst_115 : f32 to vector<1x16xf32>
    %219 = arith.addf %215, %218 : vector<1x16xf32>
    %220 = math.rsqrt %219 : vector<1x16xf32>
    %221 = vector.broadcast %220 : vector<1x16xf32> to vector<8x16xf32>
    %222 = arith.mulf %217, %221 : vector<8x16xf32>
    %c0_116 = arith.constant 0 : index
    %c0_117 = arith.constant 0 : index
    %223 = vector.load %arg19[%c0_116, %c0_117] : memref<1x16xf32, #tpu.memory_space<vmem>>, vector<1x16xf32>
    %224 = vector.broadcast %223 : vector<1x16xf32> to vector<8x16xf32>
    %225 = arith.mulf %222, %224 : vector<8x16xf32>
    %c0_118 = arith.constant 0 : index
    %c0_119 = arith.constant 0 : index
    %226 = vector.load %arg20[%c0_118, %c0_119] : memref<1x16xf32, #tpu.memory_space<vmem>>, vector<1x16xf32>
    %227 = vector.broadcast %226 : vector<1x16xf32> to vector<8x16xf32>
    %228 = arith.addf %225, %227 : vector<8x16xf32>
    %cst_120 = arith.constant 0.000000e+00 : f32
    %229 = vector.broadcast %cst_120 : f32 to vector<8x16xf32>
    %230 = arith.maximumf %228, %229 : vector<8x16xf32>
    %c0_121 = arith.constant 0 : index
    %c0_122 = arith.constant 0 : index
    %231 = vector.load %arg21[%c0_121, %c0_122] : memref<16x32xf32, #tpu.memory_space<vmem>>, vector<16x32xf32>
    %cst_123 = arith.constant dense<0.000000e+00> : vector<8x32xf32>
    %232 = tpu.matmul %230, %231, %cst_123 {dimension_numbers = #tpu.dot_dimension_numbers<[1], [0], [0], [1], [0, 0, 1, 1], [], []>} : vector<8x16xf32>, vector<16x32xf32>, vector<8x32xf32> -> vector<8x32xf32>
    %c0_124 = arith.constant 0 : index
    %c0_125 = arith.constant 0 : index
    %233 = vector.load %arg22[%c0_124, %c0_125] : memref<1x32xf32, #tpu.memory_space<vmem>>, vector<1x32xf32>
    %234 = vector.broadcast %233 : vector<1x32xf32> to vector<8x32xf32>
    %235 = arith.addf %232, %234 : vector<8x32xf32>
    %c0_126 = arith.constant 0 : index
    %c0_127 = arith.constant 0 : index
    %236 = vector.load %arg17[%c0_126, %c0_127] : memref<32x16xf32, #tpu.memory_space<vmem>>, vector<32x16xf32>
    %cst_128 = arith.constant dense<0.000000e+00> : vector<8x16xf32>
    %237 = tpu.matmul %199, %236, %cst_128 {dimension_numbers = #tpu.dot_dimension_numbers<[1], [0], [0], [1], [0, 0, 1, 1], [], []>} : vector<8x32xf32>, vector<32x16xf32>, vector<8x16xf32> -> vector<8x16xf32>
    %c0_129 = arith.constant 0 : index
    %c0_130 = arith.constant 0 : index
    %238 = vector.load %arg18[%c0_129, %c0_130] : memref<1x16xf32, #tpu.memory_space<vmem>>, vector<1x16xf32>
    %239 = vector.broadcast %238 : vector<1x16xf32> to vector<8x16xf32>
    %240 = arith.addf %237, %239 : vector<8x16xf32>
    %cst_131 = arith.constant dense<0.000000e+00> : vector<16xf32>
    %241 = vector.multi_reduction <add>, %240, %cst_131 [0] : vector<8x16xf32> to vector<16xf32>
    %242 = vector.shape_cast %241 : vector<16xf32> to vector<1x16xf32>
    %cst_132 = arith.constant 8.000000e+00 : f32
    %243 = vector.broadcast %cst_132 : f32 to vector<1x16xf32>
    %244 = arith.divf %242, %243 : vector<1x16xf32>
    %245 = vector.broadcast %244 : vector<1x16xf32> to vector<8x16xf32>
    %246 = arith.subf %240, %245 : vector<8x16xf32>
    %247 = arith.mulf %246, %246 : vector<8x16xf32>
    %cst_133 = arith.constant dense<0.000000e+00> : vector<16xf32>
    %248 = vector.multi_reduction <add>, %247, %cst_133 [0] : vector<8x16xf32> to vector<16xf32>
    %249 = vector.shape_cast %248 : vector<16xf32> to vector<1x16xf32>
    %cst_134 = arith.constant 8.000000e+00 : f32
    %250 = vector.broadcast %cst_134 : f32 to vector<1x16xf32>
    %251 = arith.divf %249, %250 : vector<1x16xf32>
    %252 = vector.broadcast %244 : vector<1x16xf32> to vector<8x16xf32>
    %253 = arith.subf %240, %252 : vector<8x16xf32>
    %cst_135 = arith.constant 9.99999974E-6 : f32
    %254 = vector.broadcast %cst_135 : f32 to vector<1x16xf32>
    %255 = arith.addf %251, %254 : vector<1x16xf32>
    %256 = math.rsqrt %255 : vector<1x16xf32>
    %257 = vector.broadcast %256 : vector<1x16xf32> to vector<8x16xf32>
    %258 = arith.mulf %253, %257 : vector<8x16xf32>
    %c0_136 = arith.constant 0 : index
    %c0_137 = arith.constant 0 : index
    %259 = vector.load %arg19[%c0_136, %c0_137] : memref<1x16xf32, #tpu.memory_space<vmem>>, vector<1x16xf32>
    %260 = vector.broadcast %259 : vector<1x16xf32> to vector<8x16xf32>
    %261 = arith.mulf %258, %260 : vector<8x16xf32>
    %c0_138 = arith.constant 0 : index
    %c0_139 = arith.constant 0 : index
    %262 = vector.load %arg20[%c0_138, %c0_139] : memref<1x16xf32, #tpu.memory_space<vmem>>, vector<1x16xf32>
    %263 = vector.broadcast %262 : vector<1x16xf32> to vector<8x16xf32>
    %264 = arith.addf %261, %263 : vector<8x16xf32>
    %cst_140 = arith.constant 0.000000e+00 : f32
    %265 = vector.broadcast %cst_140 : f32 to vector<8x16xf32>
    %266 = arith.maximumf %264, %265 : vector<8x16xf32>
    %c0_141 = arith.constant 0 : index
    %c0_142 = arith.constant 0 : index
    %267 = vector.load %arg21[%c0_141, %c0_142] : memref<16x32xf32, #tpu.memory_space<vmem>>, vector<16x32xf32>
    %cst_143 = arith.constant dense<0.000000e+00> : vector<8x32xf32>
    %268 = tpu.matmul %266, %267, %cst_143 {dimension_numbers = #tpu.dot_dimension_numbers<[1], [0], [0], [1], [0, 0, 1, 1], [], []>} : vector<8x16xf32>, vector<16x32xf32>, vector<8x32xf32> -> vector<8x32xf32>
    %c0_144 = arith.constant 0 : index
    %c0_145 = arith.constant 0 : index
    %269 = vector.load %arg22[%c0_144, %c0_145] : memref<1x32xf32, #tpu.memory_space<vmem>>, vector<1x32xf32>
    %270 = vector.broadcast %269 : vector<1x32xf32> to vector<8x32xf32>
    %271 = arith.addf %268, %270 : vector<8x32xf32>
    %272 = arith.mulf %235, %199 : vector<8x32xf32>
    %cst_146 = arith.constant dense<0.000000e+00> : vector<8xf32>
    %273 = vector.multi_reduction <add>, %272, %cst_146 [1] : vector<8x32xf32> to vector<8xf32>
    %274 = vector.shape_cast %273 : vector<8xf32> to vector<8x1xf32>
    %275 = arith.mulf %235, %235 : vector<8x32xf32>
    %cst_147 = arith.constant dense<0.000000e+00> : vector<8xf32>
    %276 = vector.multi_reduction <add>, %275, %cst_147 [1] : vector<8x32xf32> to vector<8xf32>
    %277 = vector.shape_cast %276 : vector<8xf32> to vector<8x1xf32>
    %cst_148 = arith.constant 1.000000e-16 : f32
    %278 = vector.broadcast %cst_148 : f32 to vector<8x1xf32>
    %279 = arith.maximumf %277, %278 : vector<8x1xf32>
    %280 = arith.mulf %199, %199 : vector<8x32xf32>
    %cst_149 = arith.constant dense<0.000000e+00> : vector<8xf32>
    %281 = vector.multi_reduction <add>, %280, %cst_149 [1] : vector<8x32xf32> to vector<8xf32>
    %282 = vector.shape_cast %281 : vector<8xf32> to vector<8x1xf32>
    %cst_150 = arith.constant 1.000000e-16 : f32
    %283 = vector.broadcast %cst_150 : f32 to vector<8x1xf32>
    %284 = arith.maximumf %282, %283 : vector<8x1xf32>
    %285 = arith.mulf %279, %284 : vector<8x1xf32>
    %286 = math.rsqrt %285 : vector<8x1xf32>
    %287 = arith.mulf %274, %286 : vector<8x1xf32>
    %cst_151 = arith.constant dense<0.000000e+00> : vector<1xf32>
    %288 = vector.multi_reduction <add>, %287, %cst_151 [0] : vector<8x1xf32> to vector<1xf32>
    %289 = vector.shape_cast %288 : vector<1xf32> to vector<1x1xf32>
    %cst_152 = arith.constant 0.000000e+00 : f32
    %290 = vector.broadcast %cst_152 : f32 to vector<1x1xf32>
    %291 = arith.subf %290, %289 : vector<1x1xf32>
    %cst_153 = arith.constant 8.000000e+00 : f32
    %292 = vector.broadcast %cst_153 : f32 to vector<1x1xf32>
    %293 = arith.divf %291, %292 : vector<1x1xf32>
    %cst_154 = arith.constant 5.000000e-01 : f32
    %294 = vector.broadcast %cst_154 : f32 to vector<1x1xf32>
    %295 = arith.mulf %294, %293 : vector<1x1xf32>
    %296 = arith.mulf %271, %99 : vector<8x32xf32>
    %cst_155 = arith.constant dense<0.000000e+00> : vector<8xf32>
    %297 = vector.multi_reduction <add>, %296, %cst_155 [1] : vector<8x32xf32> to vector<8xf32>
    %298 = vector.shape_cast %297 : vector<8xf32> to vector<8x1xf32>
    %299 = arith.mulf %271, %271 : vector<8x32xf32>
    %cst_156 = arith.constant dense<0.000000e+00> : vector<8xf32>
    %300 = vector.multi_reduction <add>, %299, %cst_156 [1] : vector<8x32xf32> to vector<8xf32>
    %301 = vector.shape_cast %300 : vector<8xf32> to vector<8x1xf32>
    %cst_157 = arith.constant 1.000000e-16 : f32
    %302 = vector.broadcast %cst_157 : f32 to vector<8x1xf32>
    %303 = arith.maximumf %301, %302 : vector<8x1xf32>
    %304 = arith.mulf %99, %99 : vector<8x32xf32>
    %cst_158 = arith.constant dense<0.000000e+00> : vector<8xf32>
    %305 = vector.multi_reduction <add>, %304, %cst_158 [1] : vector<8x32xf32> to vector<8xf32>
    %306 = vector.shape_cast %305 : vector<8xf32> to vector<8x1xf32>
    %cst_159 = arith.constant 1.000000e-16 : f32
    %307 = vector.broadcast %cst_159 : f32 to vector<8x1xf32>
    %308 = arith.maximumf %306, %307 : vector<8x1xf32>
    %309 = arith.mulf %303, %308 : vector<8x1xf32>
    %310 = math.rsqrt %309 : vector<8x1xf32>
    %311 = arith.mulf %298, %310 : vector<8x1xf32>
    %cst_160 = arith.constant dense<0.000000e+00> : vector<1xf32>
    %312 = vector.multi_reduction <add>, %311, %cst_160 [0] : vector<8x1xf32> to vector<1xf32>
    %313 = vector.shape_cast %312 : vector<1xf32> to vector<1x1xf32>
    %cst_161 = arith.constant 0.000000e+00 : f32
    %314 = vector.broadcast %cst_161 : f32 to vector<1x1xf32>
    %315 = arith.subf %314, %313 : vector<1x1xf32>
    %cst_162 = arith.constant 8.000000e+00 : f32
    %316 = vector.broadcast %cst_162 : f32 to vector<1x1xf32>
    %317 = arith.divf %315, %316 : vector<1x1xf32>
    %cst_163 = arith.constant 5.000000e-01 : f32
    %318 = vector.broadcast %cst_163 : f32 to vector<1x1xf32>
    %319 = arith.mulf %318, %317 : vector<1x1xf32>
    %320 = arith.addf %295, %319 : vector<1x1xf32>
    %c0_164 = arith.constant 0 : index
    %c0_165 = arith.constant 0 : index
    %321 = vector.load %arg23[%c0_164, %c0_165] : memref<1x1xf32, #tpu.memory_space<vmem>>, vector<1x1xf32>
    tpu.vector_store %arg23[%c0_164, %c0_165], %320 {strides = array<i32>} : memref<1x1xf32, #tpu.memory_space<vmem>>, vector<1x1xf32>,
    return
  }
  func.func @transform_0(%arg0: i32) -> (i32, i32, i32) {
    %c0_i32 = arith.constant 0 : i32
    %c0_i32_0 = arith.constant 0 : i32
    %c0_i32_1 = arith.constant 0 : i32
    %c0_i32_2 = arith.constant 0 : i32
    return %c0_i32, %c0_i32_0, %c0_i32_1 : i32, i32, i32
  }
  func.func @transform_1(%arg0: i32) -> (i32, i32, i32) {
    %c0_i32 = arith.constant 0 : i32
    %c0_i32_0 = arith.constant 0 : i32
    %c0_i32_1 = arith.constant 0 : i32
    %c0_i32_2 = arith.constant 0 : i32
    return %c0_i32, %c0_i32_0, %c0_i32_1 : i32, i32, i32
  }
  func.func @transform_2(%arg0: i32) -> (i32, i32) {
    %c0_i32 = arith.constant 0 : i32
    %c0_i32_0 = arith.constant 0 : i32
    %c0_i32_1 = arith.constant 0 : i32
    return %c0_i32, %c0_i32_0 : i32, i32
  }
  func.func @transform_3(%arg0: i32) -> (i32, i32) {
    %c0_i32 = arith.constant 0 : i32
    %c0_i32_0 = arith.constant 0 : i32
    %c0_i32_1 = arith.constant 0 : i32
    return %c0_i32, %c0_i32_0 : i32, i32
  }
  func.func @transform_4(%arg0: i32) -> (i32, i32) {
    %c0_i32 = arith.constant 0 : i32
    %c0_i32_0 = arith.constant 0 : i32
    %c0_i32_1 = arith.constant 0 : i32
    return %c0_i32, %c0_i32_0 : i32, i32
  }
  func.func @transform_5(%arg0: i32) -> (i32, i32) {
    %c0_i32 = arith.constant 0 : i32
    %c0_i32_0 = arith.constant 0 : i32
    %c0_i32_1 = arith.constant 0 : i32
    return %c0_i32, %c0_i32_0 : i32, i32
  }
  func.func @transform_6(%arg0: i32) -> (i32, i32) {
    %c0_i32 = arith.constant 0 : i32
    %c0_i32_0 = arith.constant 0 : i32
    %c0_i32_1 = arith.constant 0 : i32
    return %c0_i32, %c0_i32_0 : i32, i32
  }
  func.func @transform_7(%arg0: i32) -> (i32, i32) {
    %c0_i32 = arith.constant 0 : i32
    %c0_i32_0 = arith.constant 0 : i32
    %c0_i32_1 = arith.constant 0 : i32
    return %c0_i32, %c0_i32_0 : i32, i32
  }
  func.func @transform_8(%arg0: i32) -> (i32, i32) {
    %c0_i32 = arith.constant 0 : i32
    %c0_i32_0 = arith.constant 0 : i32
    %c0_i32_1 = arith.constant 0 : i32
    return %c0_i32, %c0_i32_0 : i32, i32
  }
  func.func @transform_9(%arg0: i32) -> (i32, i32) {
    %c0_i32 = arith.constant 0 : i32
    %c0_i32_0 = arith.constant 0 : i32
    %c0_i32_1 = arith.constant 0 : i32
    return %c0_i32, %c0_i32_0 : i32, i32
  }
  func.func @transform_10(%arg0: i32) -> (i32, i32) {
    %c0_i32 = arith.constant 0 : i32
    %c0_i32_0 = arith.constant 0 : i32
    %c0_i32_1 = arith.constant 0 : i32
    return %c0_i32, %c0_i32_0 : i32, i32
  }
  func.func @transform_11(%arg0: i32) -> (i32, i32) {
    %c0_i32 = arith.constant 0 : i32
    %c0_i32_0 = arith.constant 0 : i32
    %c0_i32_1 = arith.constant 0 : i32
    return %c0_i32, %c0_i32_0 : i32, i32
  }
  func.func @transform_12(%arg0: i32) -> (i32, i32) {
    %c0_i32 = arith.constant 0 : i32
    %c0_i32_0 = arith.constant 0 : i32
    %c0_i32_1 = arith.constant 0 : i32
    return %c0_i32, %c0_i32_0 : i32, i32
  }
  func.func @transform_13(%arg0: i32) -> (i32, i32) {
    %c0_i32 = arith.constant 0 : i32
    %c0_i32_0 = arith.constant 0 : i32
    %c0_i32_1 = arith.constant 0 : i32
    return %c0_i32, %c0_i32_0 : i32, i32
  }
  func.func @transform_14(%arg0: i32) -> (i32, i32) {
    %c0_i32 = arith.constant 0 : i32
    %c0_i32_0 = arith.constant 0 : i32
    %c0_i32_1 = arith.constant 0 : i32
    return %c0_i32, %c0_i32_0 : i32, i32
  }
  func.func @transform_15(%arg0: i32) -> (i32, i32) {
    %c0_i32 = arith.constant 0 : i32
    %c0_i32_0 = arith.constant 0 : i32
    %c0_i32_1 = arith.constant 0 : i32
    return %c0_i32, %c0_i32_0 : i32, i32
  }
  func.func @transform_16(%arg0: i32) -> (i32, i32) {
    %c0_i32 = arith.constant 0 : i32
    %c0_i32_0 = arith.constant 0 : i32
    %c0_i32_1 = arith.constant 0 : i32
    return %c0_i32, %c0_i32_0 : i32, i32
  }
  func.func @transform_17(%arg0: i32) -> (i32, i32) {
    %c0_i32 = arith.constant 0 : i32
    %c0_i32_0 = arith.constant 0 : i32
    %c0_i32_1 = arith.constant 0 : i32
    return %c0_i32, %c0_i32_0 : i32, i32
  }
  func.func @transform_18(%arg0: i32) -> (i32, i32) {
    %c0_i32 = arith.constant 0 : i32
    %c0_i32_0 = arith.constant 0 : i32
    %c0_i32_1 = arith.constant 0 : i32
    return %c0_i32, %c0_i32_0 : i32, i32
  }
  func.func @transform_19(%arg0: i32) -> (i32, i32) {
    %c0_i32 = arith.constant 0 : i32
    %c0_i32_0 = arith.constant 0 : i32
    %c0_i32_1 = arith.constant 0 : i32
    return %c0_i32, %c0_i32_0 : i32, i32
  }
  func.func @transform_20(%arg0: i32) -> (i32, i32) {
    %c0_i32 = arith.constant 0 : i32
    %c0_i32_0 = arith.constant 0 : i32
    %c0_i32_1 = arith.constant 0 : i32
    return %c0_i32, %c0_i32_0 : i32, i32
  }
  func.func @transform_21(%arg0: i32) -> (i32, i32) {
    %c0_i32 = arith.constant 0 : i32
    %c0_i32_0 = arith.constant 0 : i32
    %c0_i32_1 = arith.constant 0 : i32
    return %c0_i32, %c0_i32_0 : i32, i32
  }
  func.func @transform_22(%arg0: i32) -> (i32, i32) {
    %c0_i32 = arith.constant 0 : i32
    %c0_i32_0 = arith.constant 0 : i32
    %c0_i32_1 = arith.constant 0 : i32
    return %c0_i32, %c0_i32_0 : i32, i32
  }
}

</mosaic_0001>

<llo_original>
// kernel: simsiam_forward.1
$region0: #{simsiam_forward.1}
  #allocation0 [shape = 'u32[]', space=smem, size = 0x4, offset = 0x4, fixed_abs, tag = 'smem constant byte address 0x4 - core index']
  #allocation1 [shape = 'u32[72,128]{1,0:T(1,128)}', space=vmem, size = 0x9000, scoped, tag = 'internal scratch']
  %s0 = inlined_call_operand.vmem [shape: f32[8,4,256], index: 0, kind: input, shape index: {}]
  %s1 = inlined_call_operand.vmem [shape: f32[8,4,256], index: 1, kind: input, shape index: {}]
  %s2 = inlined_call_operand.vmem [shape: f32[4,32], index: 2, kind: input, shape index: {}]
  %s3 = inlined_call_operand.vmem [shape: f32[1,32], index: 3, kind: input, shape index: {}]
  %s4 = inlined_call_operand.vmem [shape: f32[32,32], index: 4, kind: input, shape index: {}]
  %s5 = inlined_call_operand.vmem [shape: f32[1,32], index: 5, kind: input, shape index: {}]
  %s6 = inlined_call_operand.vmem [shape: f32[1,32], index: 6, kind: input, shape index: {}]
  %s7 = inlined_call_operand.vmem [shape: f32[1,32], index: 7, kind: input, shape index: {}]
  %s8 = inlined_call_operand.vmem [shape: f32[32,32], index: 8, kind: input, shape index: {}]
  %s9 = inlined_call_operand.vmem [shape: f32[1,32], index: 9, kind: input, shape index: {}]
  %s10 = inlined_call_operand.vmem [shape: f32[1,32], index: 10, kind: input, shape index: {}]
  %s11 = inlined_call_operand.vmem [shape: f32[1,32], index: 11, kind: input, shape index: {}]
  %s12 = inlined_call_operand.vmem [shape: f32[32,32], index: 12, kind: input, shape index: {}]
  %s13 = inlined_call_operand.vmem [shape: f32[1,32], index: 13, kind: input, shape index: {}]
  %s14 = inlined_call_operand.vmem [shape: f32[1,32], index: 14, kind: input, shape index: {}]
  %s15 = inlined_call_operand.vmem [shape: f32[1,32], index: 15, kind: input, shape index: {}]
  %s16 = inlined_call_operand.vmem [shape: f32[32,16], index: 16, kind: input, shape index: {}]
  %s17 = inlined_call_operand.vmem [shape: f32[1,16], index: 17, kind: input, shape index: {}]
  %s18 = inlined_call_operand.vmem [shape: f32[1,16], index: 18, kind: input, shape index: {}]
  %s19 = inlined_call_operand.vmem [shape: f32[1,16], index: 19, kind: input, shape index: {}]
  %s20 = inlined_call_operand.vmem [shape: f32[16,32], index: 20, kind: input, shape index: {}]
  %s21 = inlined_call_operand.vmem [shape: f32[1,32], index: 21, kind: input, shape index: {}]
  %s22 = inlined_call_operand.hbm [shape: f32[1,1], index: 22, kind: output, shape index: {}]
  %s23 = sld [smem:[#allocation0]]
  $region98: #{simsiam_forward.1} parent=0
    _
  %s25 = ssub.s32 1, %s23
  %s26 = scalar_select 0, %s25, %s23
  $region1: #{simsiam_forward.1} parent=0
    #allocation2 [shape = 'u8[512]{0}', space=vmem, size = 0x400, scoped, tag = 'output window, operand 0, single buffered']
    #allocation3 [shape = 's32[1]{0}', space=sflag, size = 0x4, scoped, tag = 'scoped memory for simsiam_forward.1']
    %27 = vsyncpa [#allocation3], 0
    // Predicated region
    $region2: #{simsiam_forward.1} parent=1 // pred_check
      _
    $region3: #{simsiam_forward.1} parent=1 // pred_check_branch
      %29 = sbr.rel (0) target = $region5
    $region4: #{simsiam_forward.1} parent=1 // pred_region
      _
    $region5: #{simsiam_forward.1} parent=1 // pred_fallthru
      _
    // Predicated region
    $region6: #{simsiam_forward.1} parent=1 // pred_check
      _
    $region7: #{simsiam_forward.1} parent=1 // pred_check_branch
      %31 = sbr.rel (0) target = $region9
    $region8: #{simsiam_forward.1} parent=1 // pred_region
      _
    $region9: #{simsiam_forward.1} parent=1 // pred_fallthru
      _
    // Predicated region
    $region10: #{simsiam_forward.1} parent=1 // pred_check
      _
    $region11: #{simsiam_forward.1} parent=1 // pred_check_branch
      %33 = sbr.rel (0) target = $region13
    $region12: #{simsiam_forward.1} parent=1 // pred_region
      _
    $region13: #{simsiam_forward.1} parent=1 // pred_fallthru
      _
    // Predicated region
    $region14: #{simsiam_forward.1} parent=1 // pred_check
      _
    $region15: #{simsiam_forward.1} parent=1 // pred_check_branch
      %35 = sbr.rel (0) target = $region17
    $region16: #{simsiam_forward.1} parent=1 // pred_region
      _
    $region17: #{simsiam_forward.1} parent=1 // pred_fallthru
      _
    // Predicated region
    $region18: #{simsiam_forward.1} parent=1 // pred_check
      _
    $region19: #{simsiam_forward.1} parent=1 // pred_check_branch
      %37 = sbr.rel (0) target = $region21
    $region20: #{simsiam_forward.1} parent=1 // pred_region
      _
    $region21: #{simsiam_forward.1} parent=1 // pred_fallthru
      _
    // Predicated region
    $region22: #{simsiam_forward.1} parent=1 // pred_check
      _
    $region23: #{simsiam_forward.1} parent=1 // pred_check_branch
      %39 = sbr.rel (0) target = $region25
    $region24: #{simsiam_forward.1} parent=1 // pred_region
      _
    $region25: #{simsiam_forward.1} parent=1 // pred_fallthru
      _
    // Predicated region
    $region26: #{simsiam_forward.1} parent=1 // pred_check
      _
    $region27: #{simsiam_forward.1} parent=1 // pred_check_branch
      %41 = sbr.rel (0) target = $region29
    $region28: #{simsiam_forward.1} parent=1 // pred_region
      _
    $region29: #{simsiam_forward.1} parent=1 // pred_fallthru
      _
    // Predicated region
    $region30: #{simsiam_forward.1} parent=1 // pred_check
      _
    $region31: #{simsiam_forward.1} parent=1 // pred_check_branch
      %43 = sbr.rel (0) target = $region33
    $region32: #{simsiam_forward.1} parent=1 // pred_region
      _
    $region33: #{simsiam_forward.1} parent=1 // pred_fallthru
      _
    // Predicated region
    $region34: #{simsiam_forward.1} parent=1 // pred_check
      _
    $region35: #{simsiam_forward.1} parent=1 // pred_check_branch
      %45 = sbr.rel (0) target = $region37
    $region36: #{simsiam_forward.1} parent=1 // pred_region
      _
    $region37: #{simsiam_forward.1} parent=1 // pred_fallthru
      _
    // Predicated region
    $region38: #{simsiam_forward.1} parent=1 // pred_check
      _
    $region39: #{simsiam_forward.1} parent=1 // pred_check_branch
      %47 = sbr.rel (0) target = $region41
    $region40: #{simsiam_forward.1} parent=1 // pred_region
      _
    $region41: #{simsiam_forward.1} parent=1 // pred_fallthru
      _
    // Predicated region
    $region42: #{simsiam_forward.1} parent=1 // pred_check
      _
    $region43: #{simsiam_forward.1} parent=1 // pred_check_branch
      %49 = sbr.rel (0) target = $region45
    $region44: #{simsiam_forward.1} parent=1 // pred_region
      _
    $region45: #{simsiam_forward.1} parent=1 // pred_fallthru
      _
    // Predicated region
    $region46: #{simsiam_forward.1} parent=1 // pred_check
      _
    $region47: #{simsiam_forward.1} parent=1 // pred_check_branch
      %51 = sbr.rel (0) target = $region49
    $region48: #{simsiam_forward.1} parent=1 // pred_region
      _
    $region49: #{simsiam_forward.1} parent=1 // pred_fallthru
      _
    // Predicated region
    $region50: #{simsiam_forward.1} parent=1 // pred_check
      _
    $region51: #{simsiam_forward.1} parent=1 // pred_check_branch
      %53 = sbr.rel (0) target = $region53
    $region52: #{simsiam_forward.1} parent=1 // pred_region
      _
    $region53: #{simsiam_forward.1} parent=1 // pred_fallthru
      _
    // Predicated region
    $region54: #{simsiam_forward.1} parent=1 // pred_check
      _
    $region55: #{simsiam_forward.1} parent=1 // pred_check_branch
      %55 = sbr.rel (0) target = $region57
    $region56: #{simsiam_forward.1} parent=1 // pred_region
      _
    $region57: #{simsiam_forward.1} parent=1 // pred_fallthru
      _
    // Predicated region
    $region58: #{simsiam_forward.1} parent=1 // pred_check
      _
    $region59: #{simsiam_forward.1} parent=1 // pred_check_branch
      %57 = sbr.rel (0) target = $region61
    $region60: #{simsiam_forward.1} parent=1 // pred_region
      _
    $region61: #{simsiam_forward.1} parent=1 // pred_fallthru
      _
    // Predicated region
    $region62: #{simsiam_forward.1} parent=1 // pred_check
      _
    $region63: #{simsiam_forward.1} parent=1 // pred_check_branch
      %59 = sbr.rel (0) target = $region65
    $region64: #{simsiam_forward.1} parent=1 // pred_region
      _
    $region65: #{simsiam_forward.1} parent=1 // pred_fallthru
      _
    // Predicated region
    $region66: #{simsiam_forward.1} parent=1 // pred_check
      _
    $region67: #{simsiam_forward.1} parent=1 // pred_check_branch
      %61 = sbr.rel (0) target = $region69
    $region68: #{simsiam_forward.1} parent=1 // pred_region
      _
    $region69: #{simsiam_forward.1} parent=1 // pred_fallthru
      _
    // Predicated region
    $region70: #{simsiam_forward.1} parent=1 // pred_check
      _
    $region71: #{simsiam_forward.1} parent=1 // pred_check_branch
      %63 = sbr.rel (0) target = $region73
    $region72: #{simsiam_forward.1} parent=1 // pred_region
      _
    $region73: #{simsiam_forward.1} parent=1 // pred_fallthru
      _
    // Predicated region
    $region74: #{simsiam_forward.1} parent=1 // pred_check
      _
    $region75: #{simsiam_forward.1} parent=1 // pred_check_branch
      %65 = sbr.rel (0) target = $region77
    $region76: #{simsiam_forward.1} parent=1 // pred_region
      _
    $region77: #{simsiam_forward.1} parent=1 // pred_fallthru
      _
    // Predicated region
    $region78: #{simsiam_forward.1} parent=1 // pred_check
      _
    $region79: #{simsiam_forward.1} parent=1 // pred_check_branch
      %67 = sbr.rel (0) target = $region81
    $region80: #{simsiam_forward.1} parent=1 // pred_region
      _
    $region81: #{simsiam_forward.1} parent=1 // pred_fallthru
      _
    // Predicated region
    $region82: #{simsiam_forward.1} parent=1 // pred_check
      _
    $region83: #{simsiam_forward.1} parent=1 // pred_check_branch
      %69 = sbr.rel (0) target = $region85
    $region84: #{simsiam_forward.1} parent=1 // pred_region
      _
    $region85: #{simsiam_forward.1} parent=1 // pred_fallthru
      _
    // Predicated region
    $region86: #{simsiam_forward.1} parent=1 // pred_check
      _
    $region87: #{simsiam_forward.1} parent=1 // pred_check_branch
      %71 = sbr.rel (0) target = $region89
    $region88: #{simsiam_forward.1} parent=1 // pred_region
      _
    $region89: #{simsiam_forward.1} parent=1 // pred_fallthru
      _
    %v72 = vld [vmem:[%s0] sm:$0xff]
    %v73 = vld [vmem:[%s0 + $0x8] sm:$0xff]
    %v74 = vld [vmem:[%s0 + $0x10] sm:$0xff]
    %v75 = vld [vmem:[%s0 + $0x18] sm:$0xff]
    %v76 = vld [vmem:[%s0 + $0x20] sm:$0xff]
    %v77 = vld [vmem:[%s0 + $0x28] sm:$0xff]
    %v78 = vld [vmem:[%s0 + $0x30] sm:$0xff]
    %v79 = vld [vmem:[%s0 + $0x38] sm:$0xff]
    %88 = vst [vmem:[#allocation1] ss:$2 sm:$0xff] %v72
    %v89 = vld.sshfl [vmem:[#allocation1] sm:$0xff pattern:$0x75316420]
    %v90 = vld.sshfl [vmem:[#allocation1 + $0x8] sm:$0xff pattern:$0x75316420]
    %s91 = scalar_lea.vmem [#allocation1], 16
    %92 = vst [vmem:[%s91] ss:$2 sm:$0xff] %v73
    %v93 = vld.sshfl [vmem:[#allocation1 + $0x10] sm:$0xff pattern:$0x75316420]
    %v94 = vld.sshfl [vmem:[#allocation1 + $0x18] sm:$0xff pattern:$0x75316420]
    %s95 = scalar_lea.vmem [#allocation1], 32
    %96 = vst [vmem:[%s95] ss:$2 sm:$0xff] %v74
    %v97 = vld.sshfl [vmem:[#allocation1 + $0x20] sm:$0xff pattern:$0x75316420]
    %v98 = vld.sshfl [vmem:[#allocation1 + $0x28] sm:$0xff pattern:$0x75316420]
    %s99 = scalar_lea.vmem [#allocation1], 48
    %100 = vst [vmem:[%s99] ss:$2 sm:$0xff] %v75
    %v101 = vld.sshfl [vmem:[#allocation1 + $0x30] sm:$0xff pattern:$0x75316420]
    %v102 = vld.sshfl [vmem:[#allocation1 + $0x38] sm:$0xff pattern:$0x75316420]
    %103 = vst [vmem:[#allocation1] ss:$2 sm:$0xff] %v76
    %v104 = vld.sshfl [vmem:[#allocation1] sm:$0xff pattern:$0x75316420]
    %v105 = vld.sshfl [vmem:[#allocation1 + $0x8] sm:$0xff pattern:$0x75316420]
    %106 = vst [vmem:[%s91] ss:$2 sm:$0xff] %v77
    %v107 = vld.sshfl [vmem:[#allocation1 + $0x10] sm:$0xff pattern:$0x75316420]
    %v108 = vld.sshfl [vmem:[#allocation1 + $0x18] sm:$0xff pattern:$0x75316420]
    %109 = vst [vmem:[%s95] ss:$2 sm:$0xff] %v78
    %v110 = vld.sshfl [vmem:[#allocation1 + $0x20] sm:$0xff pattern:$0x75316420]
    %v111 = vld.sshfl [vmem:[#allocation1 + $0x28] sm:$0xff pattern:$0x75316420]
    %112 = vst [vmem:[%s99] ss:$2 sm:$0xff] %v79
    %v113 = vld.sshfl [vmem:[#allocation1 + $0x30] sm:$0xff pattern:$0x75316420]
    %v114 = vld.sshfl [vmem:[#allocation1 + $0x38] sm:$0xff pattern:$0x75316420]
    %vm131 = vcmask 1043456
    %v132 = vsel %vm131, %v89, 0.0
    %v133 = vsel %vm131, %v90, 0.0
    %v134 = vadd.f32 %v132, %v133
    %135 = vadd.xlane.f32.xlu0 %v134
    %v136 = vpop.xlane.xlu0 %135
    %v137 = vsel %vm131, %v93, 0.0
    %v138 = vsel %vm131, %v94, 0.0
    %v139 = vadd.f32 %v137, %v138
    %140 = vadd.xlane.f32.xlu0 %v139
    %v141 = vpop.xlane.xlu0 %140
    %v142 = vsel %vm131, %v97, 0.0
    %v143 = vsel %vm131, %v98, 0.0
    %v144 = vadd.f32 %v142, %v143
    %145 = vadd.xlane.f32.xlu0 %v144
    %v146 = vpop.xlane.xlu0 %145
    %v147 = vsel %vm131, %v101, 0.0
    %v148 = vsel %vm131, %v102, 0.0
    %v149 = vadd.f32 %v147, %v148
    %150 = vadd.xlane.f32.xlu0 %v149
    %v151 = vpop.xlane.xlu0 %150
    %v152 = vsel %vm131, %v104, 0.0
    %v153 = vsel %vm131, %v105, 0.0
    %v154 = vadd.f32 %v152, %v153
    %155 = vadd.xlane.f32.xlu0 %v154
    %v156 = vpop.xlane.xlu0 %155
    %v157 = vsel %vm131, %v107, 0.0
    %v158 = vsel %vm131, %v108, 0.0
    %v159 = vadd.f32 %v157, %v158
    %160 = vadd.xlane.f32.xlu0 %v159
    %v161 = vpop.xlane.xlu0 %160
    %v162 = vsel %vm131, %v110, 0.0
    %v163 = vsel %vm131, %v111, 0.0
    %v164 = vadd.f32 %v162, %v163
    %165 = vadd.xlane.f32.xlu0 %v164
    %v166 = vpop.xlane.xlu0 %165
    %v167 = vsel %vm131, %v113, 0.0
    %v168 = vsel %vm131, %v114, 0.0
    %v169 = vadd.f32 %v167, %v168
    %170 = vadd.xlane.f32.xlu0 %v169
    %v171 = vpop.xlane.xlu0 %170
    %v172 = vmul.f32 %v136, 0.00390625
    %v173 = vmul.f32 %v141, 0.00390625
    %v174 = vmul.f32 %v146, 0.00390625
    %v175 = vmul.f32 %v151, 0.00390625
    %v176 = vmul.f32 %v156, 0.00390625
    %v177 = vmul.f32 %v161, 0.00390625
    %v178 = vmul.f32 %v166, 0.00390625
    %v179 = vmul.f32 %v171, 0.00390625
    %v180 = vld [vmem:[%s2] sm:$0xf]
    %v181 = vld [vmem:[%s3] sm:$0x1]
    %v183 = vperm.slane %v181, 0
    %v193 = vlaneseq
    %v194 = vand.u32 %v193, 127
    %v195 = vperm.slane %v172, %v194
    %v196 = vperm.slane %v173, %v194
    %v197 = vperm.slane %v174, %v194
    %v198 = vperm.slane %v175, %v194
    %v199 = vperm.slane %v176, %v194
    %v200 = vperm.slane %v177, %v194
    %v201 = vperm.slane %v178, %v194
    %v202 = vperm.slane %v179, %v194
    %vm203 = vcmask 1041409
    %v204 = vsel %vm203, %v196, %v195
    %vm205 = vcmask 1042434
    %v206 = vsel %vm205, %v197, %v204
    %vm207 = vcmask 1043459
    %v208 = vsel %vm207, %v198, %v206
    %vm209 = vcmask 1044484
    %v210 = vsel %vm209, %v199, %v208
    %vm211 = vcmask 1045509
    %v212 = vsel %vm211, %v200, %v210
    %vm213 = vcmask 1046534
    %v214 = vsel %vm213, %v201, %v212
    %vm215 = vcmask 1047559
    %v216 = vsel %vm215, %v202, %v214
    %vm217 = vcmask 31744
    %v218 = vsel %vm217, %v216, 0
    %v221 = vsel %vm131, %v180, 0
    %223 = vmatpush.msra.mxu0 0.0
    %224 = vmatpush.msra.mxu0 0.0
    %225 = vmatpush.msra.mxu0 0.0
    %226 = vmatpush.msra.mxu0 0.0
    %227 = vmatpush.msra.mxu0 0.0
    %228 = vmatpush.msra.mxu0 0.0
    %229 = vmatpush.msra.mxu0 0.0
    %230 = vmatpush.msra.mxu0 0.0
    %231 = vmatpush.msra.mxu0 0.0
    %232 = vmatpush.msra.mxu0 0.0
    %233 = vmatpush.msra.mxu0 0.0
    %234 = vmatpush.msra.mxu0 0.0
    %235 = vmatpush.msra.mxu0 0.0
    %236 = vmatpush.msra.mxu0 0.0
    %237 = vmatpush.msra.mxu0 0.0
    %238 = vmatpush.msra.mxu0 %v221
    %239 = vmatmul.f32.gmra.mxu0 %v218
    %v240 = vpop.f32.mrf.mxu0
    %v241 = vadd.f32 %v183, %v240
    %242 = vdwg.mxu0
    %v243 = vld [vmem:[%s4] sm:$0xff]
    %v244 = vld [vmem:[%s4 + $0x8] sm:$0xff]
    %v245 = vld [vmem:[%s4 + $0x10] sm:$0xff]
    %v246 = vld [vmem:[%s4 + $0x18] sm:$0xff]
    %v247 = vld [vmem:[%s5] sm:$0x1]
    %v249 = vperm.slane %v247, 0
    %vm251 = vcmask 261120
    %v253 = vsel %vm251, %v241, 0
    %255 = vmatpush.msra.mxu0 0.0
    %256 = vmatpush.msra.mxu0 0.0
    %257 = vmatpush.msra.mxu0 0.0
    %258 = vmatpush.msra.mxu0 0.0
    %259 = vmatpush.msra.mxu0 0.0
    %260 = vmatpush.msra.mxu0 0.0
    %261 = vmatpush.msra.mxu0 0.0
    %262 = vmatpush.msra.mxu0 0.0
    %263 = vmatpush.msra.mxu0 0.0
    %264 = vmatpush.msra.mxu0 0.0
    %265 = vmatpush.msra.mxu0 0.0
    %266 = vmatpush.msra.mxu0 0.0
    %267 = vmatpush.msra.mxu0 %v246
    %268 = vmatpush.msra.mxu0 %v245
    %269 = vmatpush.msra.mxu0 %v244
    %270 = vmatpush.msra.mxu0 %v243
    %271 = vmatmul.f32.gmra.mxu0 %v253
    %v272 = vpop.f32.mrf.mxu0
    %v273 = vadd.f32 %v249, %v272
    %274 = vdwg.mxu0
    %v275 = vsel %vm251, %v273, 0.0
    %v276 = vrot.slane %v275, 4
    %v277 = vadd.f32 %v275, %v276
    %v278 = vrot.slane %v277, 2
    %v279 = vadd.f32 %v277, %v278
    %v280 = vrot.slane %v279, 1
    %v281 = vadd.f32 %v279, %v280
    %v282 = vrcp.pop 8.0
    %v283 = vmul.f32 8.0, %v282
    %v284 = vsub.f32 1.0, %v283
    %v285 = vmul.f32 %v282, %v284
    %v286 = vadd.f32 %v282, %v285
    %vm287 = vweird.f32 %v282
    %v288 = vsel %vm287, %v282, %v286
    %v289 = vmul.f32 %v281, %v288
    %v290 = vsub.f32 %v273, %v289
    %v291 = vmul.f32 %v290, %v290
    %v292 = vsel %vm251, %v291, 0.0
    %v293 = vrot.slane %v292, 4
    %v294 = vadd.f32 %v292, %v293
    %v295 = vrot.slane %v294, 2
    %v296 = vadd.f32 %v294, %v295
    %v297 = vrot.slane %v296, 1
    %v298 = vadd.f32 %v296, %v297
    %v299 = vmul.f32 %v298, %v288
    %v300 = vadd.f32 %v299, 1e-05
    %v301 = vrsqrt.pop %v300
    %v302 = vmul.f32 %v301, %v300
    %v303 = vmul.f32 %v302, %v301
    %v304 = vmul.f32 0.5, %v303
    %v305 = vsub.f32 1.5, %v304
    %v306 = vmul.f32 %v301, %v305
    %vm307 = vweird.f32 %v300
    %vm308 = vweird.f32 %v301
    %vm309 = vmor %vm307, %vm308
    %v310 = vsel %vm309, %v301, %v306
    %v311 = vmul.f32 %v290, %v310
    %v312 = vld [vmem:[%s6] sm:$0x1]
    %v314 = vperm.slane %v312, 0
    %v316 = vmul.f32 %v311, %v314
    %v317 = vld [vmem:[%s7] sm:$0x1]
    %v319 = vperm.slane %v317, 0
    %v321 = vadd.f32 %v316, %v319
    %v322 = vmax.f32 %v321, 0.0
    %v323 = vld [vmem:[%s8] sm:$0xff]
    %v324 = vld [vmem:[%s8 + $0x8] sm:$0xff]
    %v325 = vld [vmem:[%s8 + $0x10] sm:$0xff]
    %v326 = vld [vmem:[%s8 + $0x18] sm:$0xff]
    %v327 = vld [vmem:[%s9] sm:$0x1]
    %v329 = vperm.slane %v327, 0
    %v332 = vsel %vm251, %v322, 0
    %334 = vmatpush.msra.mxu0 0.0
    %335 = vmatpush.msra.mxu0 0.0
    %336 = vmatpush.msra.mxu0 0.0
    %337 = vmatpush.msra.mxu0 0.0
    %338 = vmatpush.msra.mxu0 0.0
    %339 = vmatpush.msra.mxu0 0.0
    %340 = vmatpush.msra.mxu0 0.0
    %341 = vmatpush.msra.mxu0 0.0
    %342 = vmatpush.msra.mxu0 0.0
    %343 = vmatpush.msra.mxu0 0.0
    %344 = vmatpush.msra.mxu0 0.0
    %345 = vmatpush.msra.mxu0 0.0
    %346 = vmatpush.msra.mxu0 %v326
    %347 = vmatpush.msra.mxu0 %v325
    %348 = vmatpush.msra.mxu0 %v324
    %349 = vmatpush.msra.mxu0 %v323
    %350 = vmatmul.f32.gmra.mxu0 %v332
    %v351 = vpop.f32.mrf.mxu0
    %v352 = vadd.f32 %v329, %v351
    %353 = vdwg.mxu0
    %v354 = vsel %vm251, %v352, 0.0
    %v355 = vrot.slane %v354, 4
    %v356 = vadd.f32 %v354, %v355
    %v357 = vrot.slane %v356, 2
    %v358 = vadd.f32 %v356, %v357
    %v359 = vrot.slane %v358, 1
    %v360 = vadd.f32 %v358, %v359
    %v361 = vmul.f32 %v360, %v288
    %v362 = vsub.f32 %v352, %v361
    %v363 = vmul.f32 %v362, %v362
    %v364 = vsel %vm251, %v363, 0.0
    %v365 = vrot.slane %v364, 4
    %v366 = vadd.f32 %v364, %v365
    %v367 = vrot.slane %v366, 2
    %v368 = vadd.f32 %v366, %v367
    %v369 = vrot.slane %v368, 1
    %v370 = vadd.f32 %v368, %v369
    %v371 = vmul.f32 %v370, %v288
    %v372 = vadd.f32 %v371, 1e-05
    %v373 = vrsqrt.pop %v372
    %v374 = vmul.f32 %v373, %v372
    %v375 = vmul.f32 %v374, %v373
    %v376 = vmul.f32 0.5, %v375
    %v377 = vsub.f32 1.5, %v376
    %v378 = vmul.f32 %v373, %v377
    %vm379 = vweird.f32 %v372
    %vm380 = vweird.f32 %v373
    %vm381 = vmor %vm379, %vm380
    %v382 = vsel %vm381, %v373, %v378
    %v383 = vmul.f32 %v362, %v382
    %v384 = vld [vmem:[%s10] sm:$0x1]
    %v386 = vperm.slane %v384, 0
    %v388 = vmul.f32 %v383, %v386
    %v389 = vld [vmem:[%s11] sm:$0x1]
    %v391 = vperm.slane %v389, 0
    %v393 = vadd.f32 %v388, %v391
    %v394 = vmax.f32 %v393, 0.0
    %v395 = vld [vmem:[%s12] sm:$0xff]
    %v396 = vld [vmem:[%s12 + $0x8] sm:$0xff]
    %v397 = vld [vmem:[%s12 + $0x10] sm:$0xff]
    %v398 = vld [vmem:[%s12 + $0x18] sm:$0xff]
    %v399 = vld [vmem:[%s13] sm:$0x1]
    %v401 = vperm.slane %v399, 0
    %v404 = vsel %vm251, %v394, 0
    %406 = vmatpush.msra.mxu0 0.0
    %407 = vmatpush.msra.mxu0 0.0
    %408 = vmatpush.msra.mxu0 0.0
    %409 = vmatpush.msra.mxu0 0.0
    %410 = vmatpush.msra.mxu0 0.0
    %411 = vmatpush.msra.mxu0 0.0
    %412 = vmatpush.msra.mxu0 0.0
    %413 = vmatpush.msra.mxu0 0.0
    %414 = vmatpush.msra.mxu0 0.0
    %415 = vmatpush.msra.mxu0 0.0
    %416 = vmatpush.msra.mxu0 0.0
    %417 = vmatpush.msra.mxu0 0.0
    %418 = vmatpush.msra.mxu0 %v398
    %419 = vmatpush.msra.mxu0 %v397
    %420 = vmatpush.msra.mxu0 %v396
    %421 = vmatpush.msra.mxu0 %v395
    %422 = vmatmul.f32.gmra.mxu0 %v404
    %v423 = vpop.f32.mrf.mxu0
    %v424 = vadd.f32 %v401, %v423
    %425 = vdwg.mxu0
    %v426 = vsel %vm251, %v424, 0.0
    %v427 = vrot.slane %v426, 4
    %v428 = vadd.f32 %v426, %v427
    %v429 = vrot.slane %v428, 2
    %v430 = vadd.f32 %v428, %v429
    %v431 = vrot.slane %v430, 1
    %v432 = vadd.f32 %v430, %v431
    %v433 = vmul.f32 %v432, %v288
    %v434 = vsub.f32 %v424, %v433
    %v435 = vmul.f32 %v434, %v434
    %v436 = vsel %vm251, %v435, 0.0
    %v437 = vrot.slane %v436, 4
    %v438 = vadd.f32 %v436, %v437
    %v439 = vrot.slane %v438, 2
    %v440 = vadd.f32 %v438, %v439
    %v441 = vrot.slane %v440, 1
    %v442 = vadd.f32 %v440, %v441
    %v443 = vmul.f32 %v442, %v288
    %v444 = vadd.f32 %v443, 1e-05
    %v445 = vrsqrt.pop %v444
    %v446 = vmul.f32 %v445, %v444
    %v447 = vmul.f32 %v446, %v445
    %v448 = vmul.f32 0.5, %v447
    %v449 = vsub.f32 1.5, %v448
    %v450 = vmul.f32 %v445, %v449
    %vm451 = vweird.f32 %v444
    %vm452 = vweird.f32 %v445
    %vm453 = vmor %vm451, %vm452
    %v454 = vsel %vm453, %v445, %v450
    %v455 = vmul.f32 %v434, %v454
    %v456 = vld [vmem:[%s14] sm:$0x1]
    %v458 = vperm.slane %v456, 0
    %v460 = vmul.f32 %v455, %v458
    %v461 = vld [vmem:[%s15] sm:$0x1]
    %v463 = vperm.slane %v461, 0
    %v465 = vadd.f32 %v460, %v463
    %v466 = vld [vmem:[%s1] sm:$0xff]
    %v467 = vld [vmem:[%s1 + $0x8] sm:$0xff]
    %v468 = vld [vmem:[%s1 + $0x10] sm:$0xff]
    %v469 = vld [vmem:[%s1 + $0x18] sm:$0xff]
    %v470 = vld [vmem:[%s1 + $0x20] sm:$0xff]
    %v471 = vld [vmem:[%s1 + $0x28] sm:$0xff]
    %v472 = vld [vmem:[%s1 + $0x30] sm:$0xff]
    %v473 = vld [vmem:[%s1 + $0x38] sm:$0xff]
    %482 = vst [vmem:[#allocation1] ss:$2 sm:$0xff] %v466
    %v483 = vld.sshfl [vmem:[#allocation1] sm:$0xff pattern:$0x75316420]
    %v484 = vld.sshfl [vmem:[#allocation1 + $0x8] sm:$0xff pattern:$0x75316420]
    %s485 = scalar_lea.vmem [#allocation1], 16
    %486 = vst [vmem:[%s485] ss:$2 sm:$0xff] %v467
    %v487 = vld.sshfl [vmem:[#allocation1 + $0x10] sm:$0xff pattern:$0x75316420]
    %v488 = vld.sshfl [vmem:[#allocation1 + $0x18] sm:$0xff pattern:$0x75316420]
    %s489 = scalar_lea.vmem [#allocation1], 32
    %490 = vst [vmem:[%s489] ss:$2 sm:$0xff] %v468
    %v491 = vld.sshfl [vmem:[#allocation1 + $0x20] sm:$0xff pattern:$0x75316420]
    %v492 = vld.sshfl [vmem:[#allocation1 + $0x28] sm:$0xff pattern:$0x75316420]
    %s493 = scalar_lea.vmem [#allocation1], 48
    %494 = vst [vmem:[%s493] ss:$2 sm:$0xff] %v469
    %v495 = vld.sshfl [vmem:[#allocation1 + $0x30] sm:$0xff pattern:$0x75316420]
    %v496 = vld.sshfl [vmem:[#allocation1 + $0x38] sm:$0xff pattern:$0x75316420]
    %497 = vst [vmem:[#allocation1] ss:$2 sm:$0xff] %v470
    %v498 = vld.sshfl [vmem:[#allocation1] sm:$0xff pattern:$0x75316420]
    %v499 = vld.sshfl [vmem:[#allocation1 + $0x8] sm:$0xff pattern:$0x75316420]
    %500 = vst [vmem:[%s485] ss:$2 sm:$0xff] %v471
    %v501 = vld.sshfl [vmem:[#allocation1 + $0x10] sm:$0xff pattern:$0x75316420]
    %v502 = vld.sshfl [vmem:[#allocation1 + $0x18] sm:$0xff pattern:$0x75316420]
    %503 = vst [vmem:[%s489] ss:$2 sm:$0xff] %v472
    %v504 = vld.sshfl [vmem:[#allocation1 + $0x20] sm:$0xff pattern:$0x75316420]
    %v505 = vld.sshfl [vmem:[#allocation1 + $0x28] sm:$0xff pattern:$0x75316420]
    %506 = vst [vmem:[%s493] ss:$2 sm:$0xff] %v473
    %v507 = vld.sshfl [vmem:[#allocation1 + $0x30] sm:$0xff pattern:$0x75316420]
    %v508 = vld.sshfl [vmem:[#allocation1 + $0x38] sm:$0xff pattern:$0x75316420]
    %v525 = vsel %vm131, %v483, 0.0
    %v526 = vsel %vm131, %v484, 0.0
    %v527 = vadd.f32 %v525, %v526
    %528 = vadd.xlane.f32.xlu0 %v527
    %v529 = vpop.xlane.xlu0 %528
    %v530 = vsel %vm131, %v487, 0.0
    %v531 = vsel %vm131, %v488, 0.0
    %v532 = vadd.f32 %v530, %v531
    %533 = vadd.xlane.f32.xlu0 %v532
    %v534 = vpop.xlane.xlu0 %533
    %v535 = vsel %vm131, %v491, 0.0
    %v536 = vsel %vm131, %v492, 0.0
    %v537 = vadd.f32 %v535, %v536
    %538 = vadd.xlane.f32.xlu0 %v537
    %v539 = vpop.xlane.xlu0 %538
    %v540 = vsel %vm131, %v495, 0.0
    %v541 = vsel %vm131, %v496, 0.0
    %v542 = vadd.f32 %v540, %v541
    %543 = vadd.xlane.f32.xlu0 %v542
    %v544 = vpop.xlane.xlu0 %543
    %v545 = vsel %vm131, %v498, 0.0
    %v546 = vsel %vm131, %v499, 0.0
    %v547 = vadd.f32 %v545, %v546
    %548 = vadd.xlane.f32.xlu0 %v547
    %v549 = vpop.xlane.xlu0 %548
    %v550 = vsel %vm131, %v501, 0.0
    %v551 = vsel %vm131, %v502, 0.0
    %v552 = vadd.f32 %v550, %v551
    %553 = vadd.xlane.f32.xlu0 %v552
    %v554 = vpop.xlane.xlu0 %553
    %v555 = vsel %vm131, %v504, 0.0
    %v556 = vsel %vm131, %v505, 0.0
    %v557 = vadd.f32 %v555, %v556
    %558 = vadd.xlane.f32.xlu0 %v557
    %v559 = vpop.xlane.xlu0 %558
    %v560 = vsel %vm131, %v507, 0.0
    %v561 = vsel %vm131, %v508, 0.0
    %v562 = vadd.f32 %v560, %v561
    %563 = vadd.xlane.f32.xlu0 %v562
    %v564 = vpop.xlane.xlu0 %563
    %v565 = vmul.f32 %v529, 0.00390625
    %v566 = vmul.f32 %v534, 0.00390625
    %v567 = vmul.f32 %v539, 0.00390625
    %v568 = vmul.f32 %v544, 0.00390625
    %v569 = vmul.f32 %v549, 0.00390625
    %v570 = vmul.f32 %v554, 0.00390625
    %v571 = vmul.f32 %v559, 0.00390625
    %v572 = vmul.f32 %v564, 0.00390625
    %v581 = vperm.slane %v565, %v194
    %v582 = vperm.slane %v566, %v194
    %v583 = vperm.slane %v567, %v194
    %v584 = vperm.slane %v568, %v194
    %v585 = vperm.slane %v569, %v194
    %v586 = vperm.slane %v570, %v194
    %v587 = vperm.slane %v571, %v194
    %v588 = vperm.slane %v572, %v194
    %v589 = vsel %vm203, %v582, %v581
    %v590 = vsel %vm205, %v583, %v589
    %v591 = vsel %vm207, %v584, %v590
    %v592 = vsel %vm209, %v585, %v591
    %v593 = vsel %vm211, %v586, %v592
    %v594 = vsel %vm213, %v587, %v593
    %v595 = vsel %vm215, %v588, %v594
    %v596 = vsel %vm217, %v595, 0
    %598 = vmatpush.msra.mxu0 0.0
    %599 = vmatpush.msra.mxu0 0.0
    %600 = vmatpush.msra.mxu0 0.0
    %601 = vmatpush.msra.mxu0 0.0
    %602 = vmatpush.msra.mxu0 0.0
    %603 = vmatpush.msra.mxu0 0.0
    %604 = vmatpush.msra.mxu0 0.0
    %605 = vmatpush.msra.mxu0 0.0
    %606 = vmatpush.msra.mxu0 0.0
    %607 = vmatpush.msra.mxu0 0.0
    %608 = vmatpush.msra.mxu0 0.0
    %609 = vmatpush.msra.mxu0 0.0
    %610 = vmatpush.msra.mxu0 0.0
    %611 = vmatpush.msra.mxu0 0.0
    %612 = vmatpush.msra.mxu0 0.0
    %613 = vmatpush.msra.mxu0 %v221
    %614 = vmatmul.f32.gmra.mxu0 %v596
    %v615 = vpop.f32.mrf.mxu0
    %v616 = vadd.f32 %v183, %v615
    %617 = vdwg.mxu0
    %v619 = vsel %vm251, %v616, 0
    %621 = vmatpush.msra.mxu0 0.0
    %622 = vmatpush.msra.mxu0 0.0
    %623 = vmatpush.msra.mxu0 0.0
    %624 = vmatpush.msra.mxu0 0.0
    %625 = vmatpush.msra.mxu0 0.0
    %626 = vmatpush.msra.mxu0 0.0
    %627 = vmatpush.msra.mxu0 0.0
    %628 = vmatpush.msra.mxu0 0.0
    %629 = vmatpush.msra.mxu0 0.0
    %630 = vmatpush.msra.mxu0 0.0
    %631 = vmatpush.msra.mxu0 0.0
    %632 = vmatpush.msra.mxu0 0.0
    %633 = vmatpush.msra.mxu0 %v246
    %634 = vmatpush.msra.mxu0 %v245
    %635 = vmatpush.msra.mxu0 %v244
    %636 = vmatpush.msra.mxu0 %v243
    %637 = vmatmul.f32.gmra.mxu0 %v619
    %v638 = vpop.f32.mrf.mxu0
    %v639 = vadd.f32 %v249, %v638
    %640 = vdwg.mxu0
    %v641 = vsel %vm251, %v639, 0.0
    %v642 = vrot.slane %v641, 4
    %v643 = vadd.f32 %v641, %v642
    %v644 = vrot.slane %v643, 2
    %v645 = vadd.f32 %v643, %v644
    %v646 = vrot.slane %v645, 1
    %v647 = vadd.f32 %v645, %v646
    %v648 = vmul.f32 %v647, %v288
    %v649 = vsub.f32 %v639, %v648
    %v650 = vmul.f32 %v649, %v649
    %v651 = vsel %vm251, %v650, 0.0
    %v652 = vrot.slane %v651, 4
    %v653 = vadd.f32 %v651, %v652
    %v654 = vrot.slane %v653, 2
    %v655 = vadd.f32 %v653, %v654
    %v656 = vrot.slane %v655, 1
    %v657 = vadd.f32 %v655, %v656
    %v658 = vmul.f32 %v657, %v288
    %v659 = vadd.f32 %v658, 1e-05
    %v660 = vrsqrt.pop %v659
    %v661 = vmul.f32 %v660, %v659
    %v662 = vmul.f32 %v661, %v660
    %v663 = vmul.f32 0.5, %v662
    %v664 = vsub.f32 1.5, %v663
    %v665 = vmul.f32 %v660, %v664
    %vm666 = vweird.f32 %v659
    %vm667 = vweird.f32 %v660
    %vm668 = vmor %vm666, %vm667
    %v669 = vsel %vm668, %v660, %v665
    %v670 = vmul.f32 %v649, %v669
    %v671 = vmul.f32 %v670, %v314
    %v672 = vadd.f32 %v671, %v319
    %v673 = vmax.f32 %v672, 0.0
    %v675 = vsel %vm251, %v673, 0
    %677 = vmatpush.msra.mxu0 0.0
    %678 = vmatpush.msra.mxu0 0.0
    %679 = vmatpush.msra.mxu0 0.0
    %680 = vmatpush.msra.mxu0 0.0
    %681 = vmatpush.msra.mxu0 0.0
    %682 = vmatpush.msra.mxu0 0.0
    %683 = vmatpush.msra.mxu0 0.0
    %684 = vmatpush.msra.mxu0 0.0
    %685 = vmatpush.msra.mxu0 0.0
    %686 = vmatpush.msra.mxu0 0.0
    %687 = vmatpush.msra.mxu0 0.0
    %688 = vmatpush.msra.mxu0 0.0
    %689 = vmatpush.msra.mxu0 %v326
    %690 = vmatpush.msra.mxu0 %v325
    %691 = vmatpush.msra.mxu0 %v324
    %692 = vmatpush.msra.mxu0 %v323
    %693 = vmatmul.f32.gmra.mxu0 %v675
    %v694 = vpop.f32.mrf.mxu0
    %v695 = vadd.f32 %v329, %v694
    %696 = vdwg.mxu0
    %v697 = vsel %vm251, %v695, 0.0
    %v698 = vrot.slane %v697, 4
    %v699 = vadd.f32 %v697, %v698
    %v700 = vrot.slane %v699, 2
    %v701 = vadd.f32 %v699, %v700
    %v702 = vrot.slane %v701, 1
    %v703 = vadd.f32 %v701, %v702
    %v704 = vmul.f32 %v703, %v288
    %v705 = vsub.f32 %v695, %v704
    %v706 = vmul.f32 %v705, %v705
    %v707 = vsel %vm251, %v706, 0.0
    %v708 = vrot.slane %v707, 4
    %v709 = vadd.f32 %v707, %v708
    %v710 = vrot.slane %v709, 2
    %v711 = vadd.f32 %v709, %v710
    %v712 = vrot.slane %v711, 1
    %v713 = vadd.f32 %v711, %v712
    %v714 = vmul.f32 %v713, %v288
    %v715 = vadd.f32 %v714, 1e-05
    %v716 = vrsqrt.pop %v715
    %v717 = vmul.f32 %v716, %v715
    %v718 = vmul.f32 %v717, %v716
    %v719 = vmul.f32 0.5, %v718
    %v720 = vsub.f32 1.5, %v719
    %v721 = vmul.f32 %v716, %v720
    %vm722 = vweird.f32 %v715
    %vm723 = vweird.f32 %v716
    %vm724 = vmor %vm722, %vm723
    %v725 = vsel %vm724, %v716, %v721
    %v726 = vmul.f32 %v705, %v725
    %v727 = vmul.f32 %v726, %v386
    %v728 = vadd.f32 %v727, %v391
    %v729 = vmax.f32 %v728, 0.0
    %v731 = vsel %vm251, %v729, 0
    %733 = vmatpush.msra.mxu0 0.0
    %734 = vmatpush.msra.mxu0 0.0
    %735 = vmatpush.msra.mxu0 0.0
    %736 = vmatpush.msra.mxu0 0.0
    %737 = vmatpush.msra.mxu0 0.0
    %738 = vmatpush.msra.mxu0 0.0
    %739 = vmatpush.msra.mxu0 0.0
    %740 = vmatpush.msra.mxu0 0.0
    %741 = vmatpush.msra.mxu0 0.0
    %742 = vmatpush.msra.mxu0 0.0
    %743 = vmatpush.msra.mxu0 0.0
    %744 = vmatpush.msra.mxu0 0.0
    %745 = vmatpush.msra.mxu0 %v398
    %746 = vmatpush.msra.mxu0 %v397
    %747 = vmatpush.msra.mxu0 %v396
    %748 = vmatpush.msra.mxu0 %v395
    %749 = vmatmul.f32.gmra.mxu0 %v731
    %v750 = vpop.f32.mrf.mxu0
    %v751 = vadd.f32 %v401, %v750
    %752 = vdwg.mxu0
    %v753 = vsel %vm251, %v751, 0.0
    %v754 = vrot.slane %v753, 4
    %v755 = vadd.f32 %v753, %v754
    %v756 = vrot.slane %v755, 2
    %v757 = vadd.f32 %v755, %v756
    %v758 = vrot.slane %v757, 1
    %v759 = vadd.f32 %v757, %v758
    %v760 = vmul.f32 %v759, %v288
    %v761 = vsub.f32 %v751, %v760
    %v762 = vmul.f32 %v761, %v761
    %v763 = vsel %vm251, %v762, 0.0
    %v764 = vrot.slane %v763, 4
    %v765 = vadd.f32 %v763, %v764
    %v766 = vrot.slane %v765, 2
    %v767 = vadd.f32 %v765, %v766
    %v768 = vrot.slane %v767, 1
    %v769 = vadd.f32 %v767, %v768
    %v770 = vmul.f32 %v769, %v288
    %v771 = vadd.f32 %v770, 1e-05
    %v772 = vrsqrt.pop %v771
    %v773 = vmul.f32 %v772, %v771
    %v774 = vmul.f32 %v773, %v772
    %v775 = vmul.f32 0.5, %v774
    %v776 = vsub.f32 1.5, %v775
    %v777 = vmul.f32 %v772, %v776
    %vm778 = vweird.f32 %v771
    %vm779 = vweird.f32 %v772
    %vm780 = vmor %vm778, %vm779
    %v781 = vsel %vm780, %v772, %v777
    %v782 = vmul.f32 %v761, %v781
    %v783 = vmul.f32 %v782, %v458
    %v784 = vadd.f32 %v783, %v463
    %v785 = vld [vmem:[%s16] sm:$0xff]
    %v786 = vld [vmem:[%s16 + $0x8] sm:$0xff]
    %v787 = vld [vmem:[%s16 + $0x10] sm:$0xff]
    %v788 = vld [vmem:[%s16 + $0x18] sm:$0xff]
    %v789 = vld [vmem:[%s17] sm:$0x1]
    %v791 = vperm.slane %v789, 0
    %v794 = vsel %vm251, %v465, 0
    %796 = vmatpush.msra.mxu0 0.0
    %797 = vmatpush.msra.mxu0 0.0
    %798 = vmatpush.msra.mxu0 0.0
    %799 = vmatpush.msra.mxu0 0.0
    %800 = vmatpush.msra.mxu0 0.0
    %801 = vmatpush.msra.mxu0 0.0
    %802 = vmatpush.msra.mxu0 0.0
    %803 = vmatpush.msra.mxu0 0.0
    %804 = vmatpush.msra.mxu0 0.0
    %805 = vmatpush.msra.mxu0 0.0
    %806 = vmatpush.msra.mxu0 0.0
    %807 = vmatpush.msra.mxu0 0.0
    %808 = vmatpush.msra.mxu0 %v788
    %809 = vmatpush.msra.mxu0 %v787
    %810 = vmatpush.msra.mxu0 %v786
    %811 = vmatpush.msra.mxu0 %v785
    %812 = vmatmul.f32.gmra.mxu0 %v794
    %v813 = vpop.f32.mrf.mxu0
    %v814 = vadd.f32 %v791, %v813
    %815 = vdwg.mxu0
    %vm816 = vcmask 130048
    %v817 = vsel %vm816, %v814, 0.0
    %v818 = vrot.slane %v817, 4
    %v819 = vadd.f32 %v817, %v818
    %v820 = vrot.slane %v819, 2
    %v821 = vadd.f32 %v819, %v820
    %v822 = vrot.slane %v821, 1
    %v823 = vadd.f32 %v821, %v822
    %v824 = vmul.f32 %v823, %v288
    %v825 = vsub.f32 %v814, %v824
    %v826 = vmul.f32 %v825, %v825
    %v827 = vsel %vm816, %v826, 0.0
    %v828 = vrot.slane %v827, 4
    %v829 = vadd.f32 %v827, %v828
    %v830 = vrot.slane %v829, 2
    %v831 = vadd.f32 %v829, %v830
    %v832 = vrot.slane %v831, 1
    %v833 = vadd.f32 %v831, %v832
    %v834 = vmul.f32 %v833, %v288
    %v835 = vadd.f32 %v834, 1e-05
    %v836 = vrsqrt.pop %v835
    %v837 = vmul.f32 %v836, %v835
    %v838 = vmul.f32 %v837, %v836
    %v839 = vmul.f32 0.5, %v838
    %v840 = vsub.f32 1.5, %v839
    %v841 = vmul.f32 %v836, %v840
    %vm842 = vweird.f32 %v835
    %vm843 = vweird.f32 %v836
    %vm844 = vmor %vm842, %vm843
    %v845 = vsel %vm844, %v836, %v841
    %v846 = vmul.f32 %v825, %v845
    %v847 = vld [vmem:[%s18] sm:$0x1]
    %v849 = vperm.slane %v847, 0
    %v851 = vmul.f32 %v846, %v849
    %v852 = vld [vmem:[%s19] sm:$0x1]
    %v854 = vperm.slane %v852, 0
    %v856 = vadd.f32 %v851, %v854
    %v857 = vmax.f32 %v856, 0.0
    %v858 = vld [vmem:[%s20] sm:$0xff]
    %v859 = vld [vmem:[%s20 + $0x8] sm:$0xff]
    %v860 = vld [vmem:[%s21] sm:$0x1]
    %v862 = vperm.slane %v860, 0
    %v865 = vsel %vm816, %v857, 0
    %867 = vmatpush.msra.mxu0 0.0
    %868 = vmatpush.msra.mxu0 0.0
    %869 = vmatpush.msra.mxu0 0.0
    %870 = vmatpush.msra.mxu0 0.0
    %871 = vmatpush.msra.mxu0 0.0
    %872 = vmatpush.msra.mxu0 0.0
    %873 = vmatpush.msra.mxu0 0.0
    %874 = vmatpush.msra.mxu0 0.0
    %875 = vmatpush.msra.mxu0 0.0
    %876 = vmatpush.msra.mxu0 0.0
    %877 = vmatpush.msra.mxu0 0.0
    %878 = vmatpush.msra.mxu0 0.0
    %879 = vmatpush.msra.mxu0 0.0
    %880 = vmatpush.msra.mxu0 0.0
    %881 = vmatpush.msra.mxu0 %v859
    %882 = vmatpush.msra.mxu0 %v858
    %883 = vmatmul.f32.gmra.mxu0 %v865
    %v884 = vpop.f32.mrf.mxu0
    %v885 = vadd.f32 %v862, %v884
    %886 = vdwg.mxu0
    %v888 = vsel %vm251, %v784, 0
    %890 = vmatpush.msra.mxu0 0.0
    %891 = vmatpush.msra.mxu0 0.0
    %892 = vmatpush.msra.mxu0 0.0
    %893 = vmatpush.msra.mxu0 0.0
    %894 = vmatpush.msra.mxu0 0.0
    %895 = vmatpush.msra.mxu0 0.0
    %896 = vmatpush.msra.mxu0 0.0
    %897 = vmatpush.msra.mxu0 0.0
    %898 = vmatpush.msra.mxu0 0.0
    %899 = vmatpush.msra.mxu0 0.0
    %900 = vmatpush.msra.mxu0 0.0
    %901 = vmatpush.msra.mxu0 0.0
    %902 = vmatpush.msra.mxu0 %v788
    %903 = vmatpush.msra.mxu0 %v787
    %904 = vmatpush.msra.mxu0 %v786
    %905 = vmatpush.msra.mxu0 %v785
    %906 = vmatmul.f32.gmra.mxu0 %v888
    %v907 = vpop.f32.mrf.mxu0
    %v908 = vadd.f32 %v791, %v907
    %909 = vdwg.mxu0
    %v910 = vsel %vm816, %v908, 0.0
    %v911 = vrot.slane %v910, 4
    %v912 = vadd.f32 %v910, %v911
    %v913 = vrot.slane %v912, 2
    %v914 = vadd.f32 %v912, %v913
    %v915 = vrot.slane %v914, 1
    %v916 = vadd.f32 %v914, %v915
    %v917 = vmul.f32 %v916, %v288
    %v918 = vsub.f32 %v908, %v917
    %v919 = vmul.f32 %v918, %v918
    %v920 = vsel %vm816, %v919, 0.0
    %v921 = vrot.slane %v920, 4
    %v922 = vadd.f32 %v920, %v921
    %v923 = vrot.slane %v922, 2
    %v924 = vadd.f32 %v922, %v923
    %v925 = vrot.slane %v924, 1
    %v926 = vadd.f32 %v924, %v925
    %v927 = vmul.f32 %v926, %v288
    %v928 = vadd.f32 %v927, 1e-05
    %v929 = vrsqrt.pop %v928
    %v930 = vmul.f32 %v929, %v928
    %v931 = vmul.f32 %v930, %v929
    %v932 = vmul.f32 0.5, %v931
    %v933 = vsub.f32 1.5, %v932
    %v934 = vmul.f32 %v929, %v933
    %vm935 = vweird.f32 %v928
    %vm936 = vweird.f32 %v929
    %vm937 = vmor %vm935, %vm936
    %v938 = vsel %vm937, %v929, %v934
    %v939 = vmul.f32 %v918, %v938
    %v940 = vmul.f32 %v939, %v849
    %v941 = vadd.f32 %v940, %v854
    %v942 = vmax.f32 %v941, 0.0
    %v944 = vsel %vm816, %v942, 0
    %946 = vmatpush.msra.mxu0 0.0
    %947 = vmatpush.msra.mxu0 0.0
    %948 = vmatpush.msra.mxu0 0.0
    %949 = vmatpush.msra.mxu0 0.0
    %950 = vmatpush.msra.mxu0 0.0
    %951 = vmatpush.msra.mxu0 0.0
    %952 = vmatpush.msra.mxu0 0.0
    %953 = vmatpush.msra.mxu0 0.0
    %954 = vmatpush.msra.mxu0 0.0
    %955 = vmatpush.msra.mxu0 0.0
    %956 = vmatpush.msra.mxu0 0.0
    %957 = vmatpush.msra.mxu0 0.0
    %958 = vmatpush.msra.mxu0 0.0
    %959 = vmatpush.msra.mxu0 0.0
    %960 = vmatpush.msra.mxu0 %v859
    %961 = vmatpush.msra.mxu0 %v858
    %962 = vmatmul.f32.gmra.mxu0 %v944
    %v963 = vpop.f32.mrf.mxu0
    %v964 = vadd.f32 %v862, %v963
    %965 = vdwg.mxu0
    %v966 = vmul.f32 %v885, %v784
    %v967 = vsel %vm251, %v966, 0.0
    %968 = vadd.xlane.f32.xlu0 %v967
    %v969 = vpop.xlane.xlu0 %968
    %v970 = vmul.f32 %v885, %v885
    %v971 = vsel %vm251, %v970, 0.0
    %972 = vadd.xlane.f32.xlu0 %v971
    %v973 = vpop.xlane.xlu0 %972
    %v974 = vmax.f32 %v973, 1e-16
    %v975 = vmul.f32 %v784, %v784
    %v976 = vsel %vm251, %v975, 0.0
    %977 = vadd.xlane.f32.xlu0 %v976
    %v978 = vpop.xlane.xlu0 %977
    %v979 = vmax.f32 %v978, 1e-16
    %v980 = vmul.f32 %v974, %v979
    %v981 = vrsqrt.pop %v980
    %v982 = vmul.f32 %v981, %v980
    %v983 = vmul.f32 %v982, %v981
    %v984 = vmul.f32 0.5, %v983
    %v985 = vsub.f32 1.5, %v984
    %v986 = vmul.f32 %v981, %v985
    %vm987 = vweird.f32 %v980
    %vm988 = vweird.f32 %v981
    %vm989 = vmor %vm987, %vm988
    %v990 = vsel %vm989, %v981, %v986
    %v991 = vmul.f32 %v969, %v990
    %v992 = vrot.slane %v991, 4
    %v993 = vadd.f32 %v991, %v992
    %v994 = vrot.slane %v993, 2
    %v995 = vadd.f32 %v993, %v994
    %v996 = vrot.slane %v995, 1
    %v997 = vadd.f32 %v995, %v996
    %v998 = vsub.f32 0.0, %v997
    %v999 = vmul.f32 %v998, %v288
    %v1000 = vmul.f32 %v999, 0.5
    %v1001 = vmul.f32 %v964, %v465
    %v1002 = vsel %vm251, %v1001, 0.0
    %1003 = vadd.xlane.f32.xlu0 %v1002
    %v1004 = vpop.xlane.xlu0 %1003
    %v1005 = vmul.f32 %v964, %v964
    %v1006 = vsel %vm251, %v1005, 0.0
    %1007 = vadd.xlane.f32.xlu0 %v1006
    %v1008 = vpop.xlane.xlu0 %1007
    %v1009 = vmax.f32 %v1008, 1e-16
    %v1010 = vmul.f32 %v465, %v465
    %v1011 = vsel %vm251, %v1010, 0.0
    %1012 = vadd.xlane.f32.xlu0 %v1011
    %v1013 = vpop.xlane.xlu0 %1012
    %v1014 = vmax.f32 %v1013, 1e-16
    %v1015 = vmul.f32 %v1009, %v1014
    %v1016 = vrsqrt.pop %v1015
    %v1017 = vmul.f32 %v1016, %v1015
    %v1018 = vmul.f32 %v1017, %v1016
    %v1019 = vmul.f32 0.5, %v1018
    %v1020 = vsub.f32 1.5, %v1019
    %v1021 = vmul.f32 %v1016, %v1020
    %vm1022 = vweird.f32 %v1015
    %vm1023 = vweird.f32 %v1016
    %vm1024 = vmor %vm1022, %vm1023
    %v1025 = vsel %vm1024, %v1016, %v1021
    %v1026 = vmul.f32 %v1004, %v1025
    %v1027 = vrot.slane %v1026, 4
    %v1028 = vadd.f32 %v1026, %v1027
    %v1029 = vrot.slane %v1028, 2
    %v1030 = vadd.f32 %v1028, %v1029
    %v1031 = vrot.slane %v1030, 1
    %v1032 = vadd.f32 %v1030, %v1031
    %v1033 = vsub.f32 0.0, %v1032
    %v1034 = vmul.f32 %v1033, %v288
    %v1035 = vmul.f32 %v1034, 0.5
    %v1036 = vadd.f32 %v1000, %v1035
    %vm1037 = vcmask 0
    %1038 = vst.msk [vmem:[#allocation2] sm:$0x1] %vm1037, %v1036
    // Predicated region
    $region90: #{simsiam_forward.1} parent=1 // pred_check
      _
    $region91: #{simsiam_forward.1} parent=1 // pred_check_branch
      %1040 = sbr.rel (0) target = $region93
    $region92: #{simsiam_forward.1} parent=1 // pred_region
      %1042 = vsyncadd [#allocation3], 0
      %s1044 = sshll.u32 [#allocation2], 4
      %s1045 = int_to_ptr.vmem [resolvable:$true] %s1044
      %s1046 = sshll.u32 %s22, 4
      %s1047 = int_to_ptr.hbm [resolvable:$true] %s1046
      %1049 = dma.vmem_to_hbm [thread:$0]  %s1045, 16, %s1047, [#allocation3]
    $region93: #{simsiam_forward.1} parent=1 // pred_fallthru
      _
    // Predicated region
    $region94: #{simsiam_forward.1} parent=1 // pred_check
      _
    $region95: #{simsiam_forward.1} parent=1 // pred_check_branch
      %1051 = sbr.rel (0) target = $region97
    $region96: #{simsiam_forward.1} parent=1 // pred_region
      %1053 = dma.done [#allocation3], 16
    $region97: #{simsiam_forward.1} parent=1 // pred_fallthru
      _
    %1054 = vsyncpa [#allocation3], 1

</llo_original>
